<compile_context>
chip_gen: v7x
topology: tpu7x:2x2x1
jax: 0.10.0
libtpu: 0.0.40
codegen_flags: <defaults>
</compile_context>

<pallas_src>
import functools
import math

import jax
import jax.numpy as jnp
from jax.experimental import pallas as pl
from jax.experimental.pallas import tpu as pltpu


# -----------------------------------------------------------------------------
# Fused kernel: one grid step = BT batch elements, full block (attn + MLP)
# -----------------------------------------------------------------------------
def _latent_layer_kernel(z_ref, keymask_ref, blockmask_ref,
                         g1_ref, be1_ref,
                         wq_ref, wk_ref, wv_ref, bq_ref, bk_ref, bv_ref,
                         wo_ref, bo_ref,
                         g2_ref, be2_ref,
                         w1_ref, bf1_ref, w2_ref, bf2_ref,
                         out_ref, *, NH, DH, eps):
    f32 = jnp.float32
    md = wq_ref.dtype                      # matmul operand dtype (bf16 by default)

    z = z_ref[0]                           # [M, H]   M = BT * S (batch folded into rows)

    def layer_norm(x, g_ref, b_ref):
        mu = jnp.mean(x, axis=-1, keepdims=True)
        var = jnp.mean((x - mu) * (x - mu), axis=-1, keepdims=True)
        return (x - mu) * jax.lax.rsqrt(var + eps) * g_ref[...] + b_ref[...]

    # ---------------- attention half: z + MHSA(LN1(z)) ----------------
    x1 = layer_norm(z, g1_ref, be1_ref)                      # f32
    x1m = x1.astype(md)
    q = jnp.dot(x1m, wq_ref[...], preferred_element_type=f32) + bq_ref[...]
    k = jnp.dot(x1m, wk_ref[...], preferred_element_type=f32) + bk_ref[...]
    v = jnp.dot(x1m, wv_ref[...], preferred_element_type=f32) + bv_ref[...]
    q = q * f32(1.0 / math.sqrt(DH))

    # Additive attention bias (cross-batch block mask + key-padding mask),
    # built ONCE outside the head loop (JAX does not CSE broadcast_in_dim).
    bias = blockmask_ref[...] + keymask_ref[0]               # [M, M]

    # Per-head loop is small & static -> stays unrolled (good LLO visibility).
    dn_qk = (((1,), (1,)), ((), ()))       # contract head dim of q with head dim of k
    heads = []
    for h in range(NH):
        sl = slice(h * DH, (h + 1) * DH)
        s = jax.lax.dot_general(q[:, sl], k[:, sl], dn_qk,
                                preferred_element_type=f32) + bias      # [M, M]
        s = s - jnp.max(s, axis=-1, keepdims=True)
        p = jnp.exp(s)
        p = p * pl.reciprocal(jnp.sum(p, axis=-1, keepdims=True), approx=True)
        heads.append(jnp.dot(p, v[:, sl], preferred_element_type=f32))  # [M, DH]
    ctx = jnp.concatenate(heads, axis=-1)                    # [M, H]

    o = jnp.dot(ctx.astype(md), wo_ref[...], preferred_element_type=f32) + bo_ref[...]
    z1 = z + o                          # residual stays in VMEM (no HBM round trip)

    # ---------------- MLP half: z1 + MLP(LN2(z1)) ----------------
    x2 = layer_norm(z1, g2_ref, be2_ref)
    h1 = jnp.dot(x2.astype(md), w1_ref[...], preferred_element_type=f32) + bf1_ref[...]
    # TODO(synk): PyTorch nn.GELU defaults to exact erf; tanh-approx GELU used here
    # (EUP-friendly, avoids relying on erf lowering in Mosaic).
    h1 = jax.nn.gelu(h1)
    o2 = jnp.dot(h1.astype(md), w2_ref[...], preferred_element_type=f32) + bf2_ref[...]

    out_ref[0] = z1 + o2


# -----------------------------------------------------------------------------
# Batch-tile heuristic: fold batch into matmul rows, but keep >=2 grid steps
# (two v7x TensorCores) whenever the batch allows it.
# -----------------------------------------------------------------------------
def _pick_batch_tile(B, S, target_rows=256):
    divisors = [d for d in range(1, B + 1) if B % d == 0]
    cands = [d for d in divisors if B // d >= 2] or divisors
    good = [d for d in cands if d * S <= target_rows]
    return max(good) if good else min(cands)


# -----------------------------------------------------------------------------
# Wrapper
# -----------------------------------------------------------------------------
def latent_layer_forward(z, params, pad_mask=None, *, nh_latent,
                         eps=1e-5, matmul_dtype=jnp.bfloat16):
    """z: [B, S, H] float32.  pad_mask: optional [B, S] bool, True = padded key."""
    B, S, H = z.shape
    assert H % nh_latent == 0
    DH = H // nh_latent
    FF = params["w_fc1"].shape[1]

    BT = _pick_batch_tile(B, S)          # batch elements folded per grid step
    n_tiles = B // BT
    M = BT * S                           # matmul M dimension per grid step

    # Additive key-padding mask, laid out per batch-tile: [n_tiles, 1, BT*S].
    if pad_mask is None:
        key_bias = jnp.zeros((B, S), jnp.float32)
    else:
        key_bias = jnp.where(pad_mask, jnp.float32(-1e9), jnp.float32(0.0))
    key_bias = key_bias.reshape(n_tiles, 1, M)

    # Block-diagonal bias: forbids attention across the BT batch elements that
    # were folded into one [BT*S, H] slab (all-zero when BT == 1).
    bt_ids = jnp.repeat(jnp.arange(BT, dtype=jnp.int32), S)
    block_bias = jnp.where(bt_ids[:, None] == bt_ids[None, :],
                           jnp.float32(0.0), jnp.float32(-1e9))       # [M, M]

    # Split the fused QKV params once here -> no lane slicing of qkv in-kernel.
    wq, wk, wv = (params["w_qkv"][:, i * H:(i + 1) * H] for i in range(3))
    bq, bk, bv = (params["b_qkv"][:, i * H:(i + 1) * H] for i in range(3))

    # Weight matrices in bf16 (halves HBM/VMEM traffic); biases/LN stay f32.
    md = matmul_dtype
    wq, wk, wv = wq.astype(md), wk.astype(md), wv.astype(md)
    wo = params["w_o"].astype(md)
    w1 = params["w_fc1"].astype(md)
    w2 = params["w_fc2"].astype(md)

    z_t = z.reshape(n_tiles, M, H)       # free row-major reshape in the wrapper

    rep = lambda shape: pl.BlockSpec(shape, lambda i: (0, 0))          # replicated param
    tile3 = lambda shape: pl.BlockSpec(shape, lambda i: (i, 0, 0))     # per batch-tile

    kernel = functools.partial(_latent_layer_kernel, NH=nh_latent, DH=DH, eps=eps)

    out = pl.pallas_call(
        kernel,
        out_shape=jax.ShapeDtypeStruct((n_tiles, M, H), jnp.float32),
        grid=(n_tiles,),
        in_specs=[
            tile3((1, M, H)),                                  # z slab
            tile3((1, 1, M)),                                  # key-padding bias
            rep((M, M)),                                       # block-diag batch bias
            rep((1, H)), rep((1, H)),                          # ln1 gamma, beta
            rep((H, H)), rep((H, H)), rep((H, H)),             # Wq, Wk, Wv
            rep((1, H)), rep((1, H)), rep((1, H)),             # bq, bk, bv
            rep((H, H)), rep((1, H)),                          # Wo, bo
            rep((1, H)), rep((1, H)),                          # ln2 gamma, beta
            rep((H, FF)), rep((1, FF)),                        # fc1
            rep((FF, H)), rep((1, H)),                         # fc2
        ],
        out_specs=tile3((1, M, H)),
        compiler_params=pltpu.CompilerParams(
            dimension_semantics=("parallel",),
            vmem_limit_bytes=32 * 1024 * 1024,
        ),
    )(z_t, key_bias, block_bias,
      params["ln1_g"], params["ln1_b"],
      wq, wk, wv, bq, bk, bv,
      wo, params["b_o"],
      params["ln2_g"], params["ln2_b"],
      w1, params["b_fc1"], w2, params["b_fc2"])

    return out.reshape(B, S, H)


# -----------------------------------------------------------------------------
# Pure-JAX reference (same math + same mixed-precision policy) for validation
# -----------------------------------------------------------------------------
def _reference(z, params, pad_mask, nh, eps=1e-5, matmul_dtype=jnp.bfloat16):
    B, S, H = z.shape
    DH = H // nh
    f32 = jnp.float32
    md = matmul_dtype

    def ln(x, g, b):
        mu = jnp.mean(x, -1, keepdims=True)
        var = jnp.mean((x - mu) ** 2, -1, keepdims=True)
        return (x - mu) / jnp.sqrt(var + eps) * g + b

    def mm(a, w, bias):
        return jnp.dot(a.astype(md), w.astype(md),
                       preferred_element_type=f32) + bias

    key_bias = (jnp.zeros((B, S), f32) if pad_mask is None
                else jnp.where(pad_mask, f32(-1e9), f32(0.0)))

    wq, wk, wv = (params["w_qkv"][:, i * H:(i + 1) * H] for i in range(3))
    bq, bk, bv = (params["b_qkv"][:, i * H:(i + 1) * H] for i in range(3))

    x1 = ln(z, params["ln1_g"][0], params["ln1_b"][0])
    q = mm(x1, wq, bq[0]) * (1.0 / math.sqrt(DH))
    k = mm(x1, wk, bk[0])
    v = mm(x1, wv, bv[0])
    q = q.reshape(B, S, nh, DH).transpose(0, 2, 1, 3)
    k = k.reshape(B, S, nh, DH).transpose(0, 2, 1, 3)
    v = v.reshape(B, S, nh, DH).transpose(0, 2, 1, 3)
    s = jnp.einsum("bhqd,bhkd->bhqk", q, k) + key_bias[:, None, None, :]
    p = jax.nn.softmax(s, axis=-1)
    ctx = jnp.einsum("bhqk,bhkd->bhqd", p, v).transpose(0, 2, 1, 3).reshape(B, S, H)
    z1 = z + mm(ctx, params["w_o"], params["b_o"][0])

    x2 = ln(z1, params["ln2_g"][0], params["ln2_b"][0])
    h1 = jax.nn.gelu(mm(x2, params["w_fc1"], params["b_fc1"][0]))
    z2 = z1 + mm(h1, params["w_fc2"], params["b_fc2"][0])
    return z2


# -----------------------------------------------------------------------------
if __name__ == "__main__":
    B, S, H = 4, 8, 32          # batch, latent seq, d_new
    NH, FF = 4, 64              # nh_latent, ff_hidden

    key = jax.random.PRNGKey(0)
    ks = jax.random.split(key, 8)
    std = 0.02
    params = {
        "ln1_g": jnp.ones((1, H), jnp.float32),
        "ln1_b": jnp.zeros((1, H), jnp.float32),
        "w_qkv": std * jax.random.normal(ks[0], (H, 3 * H), jnp.float32),
        "b_qkv": std * jax.random.normal(ks[1], (1, 3 * H), jnp.float32),
        "w_o":   std * jax.random.normal(ks[2], (H, H), jnp.float32),
        "b_o":   std * jax.random.normal(ks[3], (1, H), jnp.float32),
        "ln2_g": jnp.ones((1, H), jnp.float32),
        "ln2_b": jnp.zeros((1, H), jnp.float32),
        "w_fc1": std * jax.random.normal(ks[4], (H, FF), jnp.float32),
        "b_fc1": std * jax.random.normal(ks[5], (1, FF), jnp.float32),
        "w_fc2": std * jax.random.normal(ks[6], (FF, H), jnp.float32),
        "b_fc2": std * jax.random.normal(ks[7], (1, H), jnp.float32),
    }

    z = jax.random.normal(jax.random.PRNGKey(1), (B, S, H), jnp.float32)
    # mark a few positions as padding in two of the batch elements
    pad_mask = jnp.zeros((B, S), bool).at[1, -2:].set(True).at[3, -3:].set(True)

    out = latent_layer_forward(z, params, pad_mask, nh_latent=NH)
    out = jax.block_until_ready(out)

    ref = _reference(z, params, pad_mask, NH)
    assert out.shape == (B, S, H)
    max_err = float(jnp.max(jnp.abs(out - ref)))
    assert jnp.allclose(out, ref, rtol=2e-3, atol=2e-3), f"mismatch vs reference (max abs err {max_err})"
    print("KERNEL_OK")
</pallas_src>

<mosaic_0001>
module attributes {stable_mosaic.version = 11 : i64} {
  func.func @_latent_layer_kernel(%arg0: i32, %arg1: memref<1x16x32xf32, #tpu.memory_space<vmem>>, %arg2: memref<1x1x16xf32, #tpu.memory_space<vmem>>, %arg3: memref<16x16xf32, #tpu.memory_space<vmem>>, %arg4: memref<1x32xf32, #tpu.memory_space<vmem>>, %arg5: memref<1x32xf32, #tpu.memory_space<vmem>>, %arg6: memref<32x32xbf16, #tpu.memory_space<vmem>>, %arg7: memref<32x32xbf16, #tpu.memory_space<vmem>>, %arg8: memref<32x32xbf16, #tpu.memory_space<vmem>>, %arg9: memref<1x32xf32, #tpu.memory_space<vmem>>, %arg10: memref<1x32xf32, #tpu.memory_space<vmem>>, %arg11: memref<1x32xf32, #tpu.memory_space<vmem>>, %arg12: memref<32x32xbf16, #tpu.memory_space<vmem>>, %arg13: memref<1x32xf32, #tpu.memory_space<vmem>>, %arg14: memref<1x32xf32, #tpu.memory_space<vmem>>, %arg15: memref<1x32xf32, #tpu.memory_space<vmem>>, %arg16: memref<32x64xbf16, #tpu.memory_space<vmem>>, %arg17: memref<1x64xf32, #tpu.memory_space<vmem>>, %arg18: memref<64x32xbf16, #tpu.memory_space<vmem>>, %arg19: memref<1x32xf32, #tpu.memory_space<vmem>>, %arg20: memref<1x16x32xf32, #tpu.memory_space<vmem>>) attributes {dimension_semantics = [#tpu.dimension_semantics<parallel>], iteration_bounds = array<i64: 2>, scalar_prefetch = 0 : i64, scratch_operands = 0 : i64, tpu.core_type = #tpu.core_type<tc>, window_params = [{transform_indices = @transform_0, window_bounds = array<i64: 1, 16, 32>}, {transform_indices = @transform_1, window_bounds = array<i64: 1, 1, 16>}, {pipeline_mode = #tpu.pipeline_mode<synchronous>, transform_indices = @transform_2, window_bounds = array<i64: 16, 16>}, {pipeline_mode = #tpu.pipeline_mode<synchronous>, transform_indices = @transform_3, window_bounds = array<i64: 1, 32>}, {pipeline_mode = #tpu.pipeline_mode<synchronous>, transform_indices = @transform_4, window_bounds = array<i64: 1, 32>}, {pipeline_mode = #tpu.pipeline_mode<synchronous>, transform_indices = @transform_5, window_bounds = array<i64: 32, 32>}, {pipeline_mode = #tpu.pipeline_mode<synchronous>, transform_indices = @transform_6, window_bounds = array<i64: 32, 32>}, {pipeline_mode = #tpu.pipeline_mode<synchronous>, transform_indices = @transform_7, window_bounds = array<i64: 32, 32>}, {pipeline_mode = #tpu.pipeline_mode<synchronous>, transform_indices = @transform_8, window_bounds = array<i64: 1, 32>}, {pipeline_mode = #tpu.pipeline_mode<synchronous>, transform_indices = @transform_9, window_bounds = array<i64: 1, 32>}, {pipeline_mode = #tpu.pipeline_mode<synchronous>, transform_indices = @transform_10, window_bounds = array<i64: 1, 32>}, {pipeline_mode = #tpu.pipeline_mode<synchronous>, transform_indices = @transform_11, window_bounds = array<i64: 32, 32>}, {pipeline_mode = #tpu.pipeline_mode<synchronous>, transform_indices = @transform_12, window_bounds = array<i64: 1, 32>}, {pipeline_mode = #tpu.pipeline_mode<synchronous>, transform_indices = @transform_13, window_bounds = array<i64: 1, 32>}, {pipeline_mode = #tpu.pipeline_mode<synchronous>, transform_indices = @transform_14, window_bounds = array<i64: 1, 32>}, {pipeline_mode = #tpu.pipeline_mode<synchronous>, transform_indices = @transform_15, window_bounds = array<i64: 32, 64>}, {pipeline_mode = #tpu.pipeline_mode<synchronous>, transform_indices = @transform_16, window_bounds = array<i64: 1, 64>}, {pipeline_mode = #tpu.pipeline_mode<synchronous>, transform_indices = @transform_17, window_bounds = array<i64: 64, 32>}, {pipeline_mode = #tpu.pipeline_mode<synchronous>, transform_indices = @transform_18, window_bounds = array<i64: 1, 32>}, {transform_indices = @transform_19, window_bounds = array<i64: 1, 16, 32>}]} {
    %c0 = arith.constant 0 : index
    %c0_0 = arith.constant 0 : index
    %c0_1 = arith.constant 0 : index
    %0 = vector.load %arg1[%c0, %c0_0, %c0_1] : memref<1x16x32xf32, #tpu.memory_space<vmem>>, vector<1x16x32xf32>
    %1 = vector.shape_cast %0 : vector<1x16x32xf32> to vector<16x32xf32>
    %cst = arith.constant dense<0.000000e+00> : vector<16xf32>
    %2 = vector.multi_reduction <add>, %1, %cst [1] : vector<16x32xf32> to vector<16xf32>
    %3 = vector.shape_cast %2 : vector<16xf32> to vector<16x1xf32>
    %cst_2 = arith.constant 3.200000e+01 : f32
    %4 = vector.broadcast %cst_2 : f32 to vector<16x1xf32>
    %5 = arith.divf %3, %4 : vector<16x1xf32>
    %6 = vector.broadcast %5 : vector<16x1xf32> to vector<16x32xf32>
    %7 = arith.subf %1, %6 : vector<16x32xf32>
    %8 = vector.broadcast %5 : vector<16x1xf32> to vector<16x32xf32>
    %9 = arith.subf %1, %8 : vector<16x32xf32>
    %10 = arith.mulf %7, %9 : vector<16x32xf32>
    %cst_3 = arith.constant dense<0.000000e+00> : vector<16xf32>
    %11 = vector.multi_reduction <add>, %10, %cst_3 [1] : vector<16x32xf32> to vector<16xf32>
    %12 = vector.shape_cast %11 : vector<16xf32> to vector<16x1xf32>
    %cst_4 = arith.constant 3.200000e+01 : f32
    %13 = vector.broadcast %cst_4 : f32 to vector<16x1xf32>
    %14 = arith.divf %12, %13 : vector<16x1xf32>
    %15 = vector.broadcast %5 : vector<16x1xf32> to vector<16x32xf32>
    %16 = arith.subf %1, %15 : vector<16x32xf32>
    %cst_5 = arith.constant 9.99999974E-6 : f32
    %17 = vector.broadcast %cst_5 : f32 to vector<16x1xf32>
    %18 = arith.addf %14, %17 : vector<16x1xf32>
    %19 = math.rsqrt %18 : vector<16x1xf32>
    %20 = vector.broadcast %19 : vector<16x1xf32> to vector<16x32xf32>
    %21 = arith.mulf %16, %20 : vector<16x32xf32>
    %c0_6 = arith.constant 0 : index
    %c0_7 = arith.constant 0 : index
    %22 = vector.load %arg4[%c0_6, %c0_7] : memref<1x32xf32, #tpu.memory_space<vmem>>, vector<1x32xf32>
    %23 = vector.broadcast %22 : vector<1x32xf32> to vector<16x32xf32>
    %24 = arith.mulf %21, %23 : vector<16x32xf32>
    %c0_8 = arith.constant 0 : index
    %c0_9 = arith.constant 0 : index
    %25 = vector.load %arg5[%c0_8, %c0_9] : memref<1x32xf32, #tpu.memory_space<vmem>>, vector<1x32xf32>
    %26 = vector.broadcast %25 : vector<1x32xf32> to vector<16x32xf32>
    %27 = arith.addf %24, %26 : vector<16x32xf32>
    %28 = arith.truncf %27 : vector<16x32xf32> to vector<16x32xbf16>
    %c0_10 = arith.constant 0 : index
    %c0_11 = arith.constant 0 : index
    %29 = vector.load %arg6[%c0_10, %c0_11] : memref<32x32xbf16, #tpu.memory_space<vmem>>, vector<32x32xbf16>
    %cst_12 = arith.constant dense<0.000000e+00> : vector<16x32xf32>
    %30 = tpu.matmul %28, %29, %cst_12 {dimension_numbers = #tpu.dot_dimension_numbers<[1], [0], [0], [1], [0, 0, 1, 1], [], []>} : vector<16x32xbf16>, vector<32x32xbf16>, vector<16x32xf32> -> vector<16x32xf32>
    %c0_13 = arith.constant 0 : index
    %c0_14 = arith.constant 0 : index
    %31 = vector.load %arg9[%c0_13, %c0_14] : memref<1x32xf32, #tpu.memory_space<vmem>>, vector<1x32xf32>
    %32 = vector.broadcast %31 : vector<1x32xf32> to vector<16x32xf32>
    %33 = arith.addf %30, %32 : vector<16x32xf32>
    %c0_15 = arith.constant 0 : index
    %c0_16 = arith.constant 0 : index
    %34 = vector.load %arg7[%c0_15, %c0_16] : memref<32x32xbf16, #tpu.memory_space<vmem>>, vector<32x32xbf16>
    %cst_17 = arith.constant dense<0.000000e+00> : vector<16x32xf32>
    %35 = tpu.matmul %28, %34, %cst_17 {dimension_numbers = #tpu.dot_dimension_numbers<[1], [0], [0], [1], [0, 0, 1, 1], [], []>} : vector<16x32xbf16>, vector<32x32xbf16>, vector<16x32xf32> -> vector<16x32xf32>
    %c0_18 = arith.constant 0 : index
    %c0_19 = arith.constant 0 : index
    %36 = vector.load %arg10[%c0_18, %c0_19] : memref<1x32xf32, #tpu.memory_space<vmem>>, vector<1x32xf32>
    %37 = vector.broadcast %36 : vector<1x32xf32> to vector<16x32xf32>
    %38 = arith.addf %35, %37 : vector<16x32xf32>
    %c0_20 = arith.constant 0 : index
    %c0_21 = arith.constant 0 : index
    %39 = vector.load %arg8[%c0_20, %c0_21] : memref<32x32xbf16, #tpu.memory_space<vmem>>, vector<32x32xbf16>
    %cst_22 = arith.constant dense<0.000000e+00> : vector<16x32xf32>
    %40 = tpu.matmul %28, %39, %cst_22 {dimension_numbers = #tpu.dot_dimension_numbers<[1], [0], [0], [1], [0, 0, 1, 1], [], []>} : vector<16x32xbf16>, vector<32x32xbf16>, vector<16x32xf32> -> vector<16x32xf32>
    %c0_23 = arith.constant 0 : index
    %c0_24 = arith.constant 0 : index
    %41 = vector.load %arg11[%c0_23, %c0_24] : memref<1x32xf32, #tpu.memory_space<vmem>>, vector<1x32xf32>
    %42 = vector.broadcast %41 : vector<1x32xf32> to vector<16x32xf32>
    %43 = arith.addf %40, %42 : vector<16x32xf32>
    %cst_25 = arith.constant 0.353553385 : f32
    %44 = vector.broadcast %cst_25 : f32 to vector<16x32xf32>
    %45 = arith.mulf %33, %44 : vector<16x32xf32>
    %c0_26 = arith.constant 0 : index
    %c0_27 = arith.constant 0 : index
    %46 = vector.load %arg3[%c0_26, %c0_27] : memref<16x16xf32, #tpu.memory_space<vmem>>, vector<16x16xf32>
    %c0_28 = arith.constant 0 : index
    %c0_29 = arith.constant 0 : index
    %c0_30 = arith.constant 0 : index
    %47 = vector.load %arg2[%c0_28, %c0_29, %c0_30] : memref<1x1x16xf32, #tpu.memory_space<vmem>>, vector<1x1x16xf32>
    %48 = vector.shape_cast %47 : vector<1x1x16xf32> to vector<1x16xf32>
    %49 = vector.broadcast %48 : vector<1x16xf32> to vector<16x16xf32>
    %50 = arith.addf %46, %49 : vector<16x16xf32>
    %51 = vector.extract_strided_slice %45 {offsets = [0, 0], sizes = [16, 8], strides = [1, 1]} : vector<16x32xf32> to vector<16x8xf32>
    %52 = vector.extract_strided_slice %38 {offsets = [0, 0], sizes = [16, 8], strides = [1, 1]} : vector<16x32xf32> to vector<16x8xf32>
    %cst_31 = arith.constant dense<0.000000e+00> : vector<16x16xf32>
    %53 = tpu.matmul %51, %52, %cst_31 {dimension_numbers = #tpu.dot_dimension_numbers<[1], [1], [0], [0], [0, 0, 1, 0], [], []>} : vector<16x8xf32>, vector<16x8xf32>, vector<16x16xf32> -> vector<16x16xf32>
    %54 = arith.addf %53, %50 : vector<16x16xf32>
    %cst_32 = arith.constant dense<0xFF800000> : vector<16xf32>
    %55 = vector.multi_reduction <maximumf>, %54, %cst_32 [1] : vector<16x16xf32> to vector<16xf32>
    %56 = vector.shape_cast %55 : vector<16xf32> to vector<16x1xf32>
    %57 = vector.broadcast %56 : vector<16x1xf32> to vector<16x16xf32>
    %58 = arith.subf %54, %57 : vector<16x16xf32>
    %59 = math.exp %58 : vector<16x16xf32>
    %cst_33 = arith.constant dense<0.000000e+00> : vector<16xf32>
    %60 = vector.multi_reduction <add>, %59, %cst_33 [1] : vector<16x16xf32> to vector<16xf32>
    %61 = vector.shape_cast %60 : vector<16xf32> to vector<16x1xf32>
    %62 = tpu.reciprocal %61 {approx = true} : vector<16x1xf32> -> vector<16x1xf32>
    %63 = vector.broadcast %62 : vector<16x1xf32> to vector<16x16xf32>
    %64 = arith.mulf %59, %63 : vector<16x16xf32>
    %65 = vector.extract_strided_slice %43 {offsets = [0, 0], sizes = [16, 8], strides = [1, 1]} : vector<16x32xf32> to vector<16x8xf32>
    %cst_34 = arith.constant dense<0.000000e+00> : vector<16x8xf32>
    %66 = tpu.matmul %64, %65, %cst_34 {dimension_numbers = #tpu.dot_dimension_numbers<[1], [0], [0], [1], [0, 0, 1, 1], [], []>} : vector<16x16xf32>, vector<16x8xf32>, vector<16x8xf32> -> vector<16x8xf32>
    %67 = vector.extract_strided_slice %45 {offsets = [0, 8], sizes = [16, 8], strides = [1, 1]} : vector<16x32xf32> to vector<16x8xf32>
    %68 = vector.extract_strided_slice %38 {offsets = [0, 8], sizes = [16, 8], strides = [1, 1]} : vector<16x32xf32> to vector<16x8xf32>
    %cst_35 = arith.constant dense<0.000000e+00> : vector<16x16xf32>
    %69 = tpu.matmul %67, %68, %cst_35 {dimension_numbers = #tpu.dot_dimension_numbers<[1], [1], [0], [0], [0, 0, 1, 0], [], []>} : vector<16x8xf32>, vector<16x8xf32>, vector<16x16xf32> -> vector<16x16xf32>
    %70 = arith.addf %69, %50 : vector<16x16xf32>
    %cst_36 = arith.constant dense<0xFF800000> : vector<16xf32>
    %71 = vector.multi_reduction <maximumf>, %70, %cst_36 [1] : vector<16x16xf32> to vector<16xf32>
    %72 = vector.shape_cast %71 : vector<16xf32> to vector<16x1xf32>
    %73 = vector.broadcast %72 : vector<16x1xf32> to vector<16x16xf32>
    %74 = arith.subf %70, %73 : vector<16x16xf32>
    %75 = math.exp %74 : vector<16x16xf32>
    %cst_37 = arith.constant dense<0.000000e+00> : vector<16xf32>
    %76 = vector.multi_reduction <add>, %75, %cst_37 [1] : vector<16x16xf32> to vector<16xf32>
    %77 = vector.shape_cast %76 : vector<16xf32> to vector<16x1xf32>
    %78 = tpu.reciprocal %77 {approx = true} : vector<16x1xf32> -> vector<16x1xf32>
    %79 = vector.broadcast %78 : vector<16x1xf32> to vector<16x16xf32>
    %80 = arith.mulf %75, %79 : vector<16x16xf32>
    %81 = vector.extract_strided_slice %43 {offsets = [0, 8], sizes = [16, 8], strides = [1, 1]} : vector<16x32xf32> to vector<16x8xf32>
    %cst_38 = arith.constant dense<0.000000e+00> : vector<16x8xf32>
    %82 = tpu.matmul %80, %81, %cst_38 {dimension_numbers = #tpu.dot_dimension_numbers<[1], [0], [0], [1], [0, 0, 1, 1], [], []>} : vector<16x16xf32>, vector<16x8xf32>, vector<16x8xf32> -> vector<16x8xf32>
    %83 = vector.extract_strided_slice %45 {offsets = [0, 16], sizes = [16, 8], strides = [1, 1]} : vector<16x32xf32> to vector<16x8xf32>
    %84 = vector.extract_strided_slice %38 {offsets = [0, 16], sizes = [16, 8], strides = [1, 1]} : vector<16x32xf32> to vector<16x8xf32>
    %cst_39 = arith.constant dense<0.000000e+00> : vector<16x16xf32>
    %85 = tpu.matmul %83, %84, %cst_39 {dimension_numbers = #tpu.dot_dimension_numbers<[1], [1], [0], [0], [0, 0, 1, 0], [], []>} : vector<16x8xf32>, vector<16x8xf32>, vector<16x16xf32> -> vector<16x16xf32>
    %86 = arith.addf %85, %50 : vector<16x16xf32>
    %cst_40 = arith.constant dense<0xFF800000> : vector<16xf32>
    %87 = vector.multi_reduction <maximumf>, %86, %cst_40 [1] : vector<16x16xf32> to vector<16xf32>
    %88 = vector.shape_cast %87 : vector<16xf32> to vector<16x1xf32>
    %89 = vector.broadcast %88 : vector<16x1xf32> to vector<16x16xf32>
    %90 = arith.subf %86, %89 : vector<16x16xf32>
    %91 = math.exp %90 : vector<16x16xf32>
    %cst_41 = arith.constant dense<0.000000e+00> : vector<16xf32>
    %92 = vector.multi_reduction <add>, %91, %cst_41 [1] : vector<16x16xf32> to vector<16xf32>
    %93 = vector.shape_cast %92 : vector<16xf32> to vector<16x1xf32>
    %94 = tpu.reciprocal %93 {approx = true} : vector<16x1xf32> -> vector<16x1xf32>
    %95 = vector.broadcast %94 : vector<16x1xf32> to vector<16x16xf32>
    %96 = arith.mulf %91, %95 : vector<16x16xf32>
    %97 = vector.extract_strided_slice %43 {offsets = [0, 16], sizes = [16, 8], strides = [1, 1]} : vector<16x32xf32> to vector<16x8xf32>
    %cst_42 = arith.constant dense<0.000000e+00> : vector<16x8xf32>
    %98 = tpu.matmul %96, %97, %cst_42 {dimension_numbers = #tpu.dot_dimension_numbers<[1], [0], [0], [1], [0, 0, 1, 1], [], []>} : vector<16x16xf32>, vector<16x8xf32>, vector<16x8xf32> -> vector<16x8xf32>
    %99 = vector.extract_strided_slice %45 {offsets = [0, 24], sizes = [16, 8], strides = [1, 1]} : vector<16x32xf32> to vector<16x8xf32>
    %100 = vector.extract_strided_slice %38 {offsets = [0, 24], sizes = [16, 8], strides = [1, 1]} : vector<16x32xf32> to vector<16x8xf32>
    %cst_43 = arith.constant dense<0.000000e+00> : vector<16x16xf32>
    %101 = tpu.matmul %99, %100, %cst_43 {dimension_numbers = #tpu.dot_dimension_numbers<[1], [1], [0], [0], [0, 0, 1, 0], [], []>} : vector<16x8xf32>, vector<16x8xf32>, vector<16x16xf32> -> vector<16x16xf32>
    %102 = arith.addf %101, %50 : vector<16x16xf32>
    %cst_44 = arith.constant dense<0xFF800000> : vector<16xf32>
    %103 = vector.multi_reduction <maximumf>, %102, %cst_44 [1] : vector<16x16xf32> to vector<16xf32>
    %104 = vector.shape_cast %103 : vector<16xf32> to vector<16x1xf32>
    %105 = vector.broadcast %104 : vector<16x1xf32> to vector<16x16xf32>
    %106 = arith.subf %102, %105 : vector<16x16xf32>
    %107 = math.exp %106 : vector<16x16xf32>
    %cst_45 = arith.constant dense<0.000000e+00> : vector<16xf32>
    %108 = vector.multi_reduction <add>, %107, %cst_45 [1] : vector<16x16xf32> to vector<16xf32>
    %109 = vector.shape_cast %108 : vector<16xf32> to vector<16x1xf32>
    %110 = tpu.reciprocal %109 {approx = true} : vector<16x1xf32> -> vector<16x1xf32>
    %111 = vector.broadcast %110 : vector<16x1xf32> to vector<16x16xf32>
    %112 = arith.mulf %107, %111 : vector<16x16xf32>
    %113 = vector.extract_strided_slice %43 {offsets = [0, 24], sizes = [16, 8], strides = [1, 1]} : vector<16x32xf32> to vector<16x8xf32>
    %cst_46 = arith.constant dense<0.000000e+00> : vector<16x8xf32>
    %114 = tpu.matmul %112, %113, %cst_46 {dimension_numbers = #tpu.dot_dimension_numbers<[1], [0], [0], [1], [0, 0, 1, 1], [], []>} : vector<16x16xf32>, vector<16x8xf32>, vector<16x8xf32> -> vector<16x8xf32>
    %115 = tpu.concatenate %66, %82, %98, %114 in 1 : vector<16x8xf32>, vector<16x8xf32>, vector<16x8xf32>, vector<16x8xf32> -> vector<16x32xf32>
    %116 = arith.truncf %115 : vector<16x32xf32> to vector<16x32xbf16>
    %c0_47 = arith.constant 0 : index
    %c0_48 = arith.constant 0 : index
    %117 = vector.load %arg12[%c0_47, %c0_48] : memref<32x32xbf16, #tpu.memory_space<vmem>>, vector<32x32xbf16>
    %cst_49 = arith.constant dense<0.000000e+00> : vector<16x32xf32>
    %118 = tpu.matmul %116, %117, %cst_49 {dimension_numbers = #tpu.dot_dimension_numbers<[1], [0], [0], [1], [0, 0, 1, 1], [], []>} : vector<16x32xbf16>, vector<32x32xbf16>, vector<16x32xf32> -> vector<16x32xf32>
    %c0_50 = arith.constant 0 : index
    %c0_51 = arith.constant 0 : index
    %119 = vector.load %arg13[%c0_50, %c0_51] : memref<1x32xf32, #tpu.memory_space<vmem>>, vector<1x32xf32>
    %120 = vector.broadcast %119 : vector<1x32xf32> to vector<16x32xf32>
    %121 = arith.addf %118, %120 : vector<16x32xf32>
    %122 = arith.addf %1, %121 : vector<16x32xf32>
    %cst_52 = arith.constant dense<0.000000e+00> : vector<16xf32>
    %123 = vector.multi_reduction <add>, %122, %cst_52 [1] : vector<16x32xf32> to vector<16xf32>
    %124 = vector.shape_cast %123 : vector<16xf32> to vector<16x1xf32>
    %cst_53 = arith.constant 3.200000e+01 : f32
    %125 = vector.broadcast %cst_53 : f32 to vector<16x1xf32>
    %126 = arith.divf %124, %125 : vector<16x1xf32>
    %127 = vector.broadcast %126 : vector<16x1xf32> to vector<16x32xf32>
    %128 = arith.subf %122, %127 : vector<16x32xf32>
    %129 = vector.broadcast %126 : vector<16x1xf32> to vector<16x32xf32>
    %130 = arith.subf %122, %129 : vector<16x32xf32>
    %131 = arith.mulf %128, %130 : vector<16x32xf32>
    %cst_54 = arith.constant dense<0.000000e+00> : vector<16xf32>
    %132 = vector.multi_reduction <add>, %131, %cst_54 [1] : vector<16x32xf32> to vector<16xf32>
    %133 = vector.shape_cast %132 : vector<16xf32> to vector<16x1xf32>
    %cst_55 = arith.constant 3.200000e+01 : f32
    %134 = vector.broadcast %cst_55 : f32 to vector<16x1xf32>
    %135 = arith.divf %133, %134 : vector<16x1xf32>
    %136 = vector.broadcast %126 : vector<16x1xf32> to vector<16x32xf32>
    %137 = arith.subf %122, %136 : vector<16x32xf32>
    %cst_56 = arith.constant 9.99999974E-6 : f32
    %138 = vector.broadcast %cst_56 : f32 to vector<16x1xf32>
    %139 = arith.addf %135, %138 : vector<16x1xf32>
    %140 = math.rsqrt %139 : vector<16x1xf32>
    %141 = vector.broadcast %140 : vector<16x1xf32> to vector<16x32xf32>
    %142 = arith.mulf %137, %141 : vector<16x32xf32>
    %c0_57 = arith.constant 0 : index
    %c0_58 = arith.constant 0 : index
    %143 = vector.load %arg14[%c0_57, %c0_58] : memref<1x32xf32, #tpu.memory_space<vmem>>, vector<1x32xf32>
    %144 = vector.broadcast %143 : vector<1x32xf32> to vector<16x32xf32>
    %145 = arith.mulf %142, %144 : vector<16x32xf32>
    %c0_59 = arith.constant 0 : index
    %c0_60 = arith.constant 0 : index
    %146 = vector.load %arg15[%c0_59, %c0_60] : memref<1x32xf32, #tpu.memory_space<vmem>>, vector<1x32xf32>
    %147 = vector.broadcast %146 : vector<1x32xf32> to vector<16x32xf32>
    %148 = arith.addf %145, %147 : vector<16x32xf32>
    %149 = arith.truncf %148 : vector<16x32xf32> to vector<16x32xbf16>
    %c0_61 = arith.constant 0 : index
    %c0_62 = arith.constant 0 : index
    %150 = vector.load %arg16[%c0_61, %c0_62] : memref<32x64xbf16, #tpu.memory_space<vmem>>, vector<32x64xbf16>
    %cst_63 = arith.constant dense<0.000000e+00> : vector<16x64xf32>
    %151 = tpu.matmul %149, %150, %cst_63 {dimension_numbers = #tpu.dot_dimension_numbers<[1], [0], [0], [1], [0, 0, 1, 1], [], []>} : vector<16x32xbf16>, vector<32x64xbf16>, vector<16x64xf32> -> vector<16x64xf32>
    %c0_64 = arith.constant 0 : index
    %c0_65 = arith.constant 0 : index
    %152 = vector.load %arg17[%c0_64, %c0_65] : memref<1x64xf32, #tpu.memory_space<vmem>>, vector<1x64xf32>
    %153 = vector.broadcast %152 : vector<1x64xf32> to vector<16x64xf32>
    %154 = arith.addf %151, %153 : vector<16x64xf32>
    %155 = arith.mulf %154, %154 : vector<16x64xf32>
    %156 = arith.mulf %154, %155 : vector<16x64xf32>
    %cst_66 = arith.constant 4.471500e-02 : f32
    %157 = vector.broadcast %cst_66 : f32 to vector<16x64xf32>
    %158 = arith.mulf %157, %156 : vector<16x64xf32>
    %159 = arith.addf %154, %158 : vector<16x64xf32>
    %cst_67 = arith.constant 0.797884583 : f32
    %160 = vector.broadcast %cst_67 : f32 to vector<16x64xf32>
    %161 = arith.mulf %160, %159 : vector<16x64xf32>
    %162 = math.tanh %161 : vector<16x64xf32>
    %cst_68 = arith.constant 1.000000e+00 : f32
    %163 = vector.broadcast %cst_68 : f32 to vector<16x64xf32>
    %164 = arith.addf %163, %162 : vector<16x64xf32>
    %cst_69 = arith.constant 5.000000e-01 : f32
    %165 = vector.broadcast %cst_69 : f32 to vector<16x64xf32>
    %166 = arith.mulf %165, %164 : vector<16x64xf32>
    %167 = arith.mulf %154, %166 : vector<16x64xf32>
    %168 = arith.truncf %167 : vector<16x64xf32> to vector<16x64xbf16>
    %c0_70 = arith.constant 0 : index
    %c0_71 = arith.constant 0 : index
    %169 = vector.load %arg18[%c0_70, %c0_71] : memref<64x32xbf16, #tpu.memory_space<vmem>>, vector<64x32xbf16>
    %cst_72 = arith.constant dense<0.000000e+00> : vector<16x32xf32>
    %170 = tpu.matmul %168, %169, %cst_72 {dimension_numbers = #tpu.dot_dimension_numbers<[1], [0], [0], [1], [0, 0, 1, 1], [], []>} : vector<16x64xbf16>, vector<64x32xbf16>, vector<16x32xf32> -> vector<16x32xf32>
    %c0_73 = arith.constant 0 : index
    %c0_74 = arith.constant 0 : index
    %171 = vector.load %arg19[%c0_73, %c0_74] : memref<1x32xf32, #tpu.memory_space<vmem>>, vector<1x32xf32>
    %172 = vector.broadcast %171 : vector<1x32xf32> to vector<16x32xf32>
    %173 = arith.addf %170, %172 : vector<16x32xf32>
    %174 = arith.addf %122, %173 : vector<16x32xf32>
    %c0_75 = arith.constant 0 : index
    %c0_76 = arith.constant 0 : index
    %c0_77 = arith.constant 0 : index
    %175 = vector.load %arg20[%c0_75, %c0_76, %c0_77] : memref<1x16x32xf32, #tpu.memory_space<vmem>>, vector<1x16x32xf32>
    %176 = vector.shape_cast %175 : vector<1x16x32xf32> to vector<16x32xf32>
    %177 = vector.shape_cast %174 : vector<16x32xf32> to vector<1x16x32xf32>
    tpu.vector_store %arg20[%c0_75, %c0_76, %c0_77], %177 {strides = array<i32>} : memref<1x16x32xf32, #tpu.memory_space<vmem>>, vector<1x16x32xf32>,
    return
  }
  func.func @transform_0(%arg0: i32) -> (i32, i32, i32) {
    %c0_i32 = arith.constant 0 : i32
    %c0_i32_0 = arith.constant 0 : i32
    %c0_i32_1 = arith.constant 0 : i32
    return %arg0, %c0_i32, %c0_i32_0 : i32, i32, i32
  }
  func.func @transform_1(%arg0: i32) -> (i32, i32, i32) {
    %c0_i32 = arith.constant 0 : i32
    %c0_i32_0 = arith.constant 0 : i32
    %c0_i32_1 = arith.constant 0 : i32
    return %arg0, %c0_i32, %c0_i32_0 : i32, i32, i32
  }
  func.func @transform_2(%arg0: i32) -> (i32, i32) {
    %c0_i32 = arith.constant 0 : i32
    %c0_i32_0 = arith.constant 0 : i32
    %c0_i32_1 = arith.constant 0 : i32
    return %c0_i32, %c0_i32_0 : i32, i32
  }
  func.func @transform_3(%arg0: i32) -> (i32, i32) {
    %c0_i32 = arith.constant 0 : i32
    %c0_i32_0 = arith.constant 0 : i32
    %c0_i32_1 = arith.constant 0 : i32
    return %c0_i32, %c0_i32_0 : i32, i32
  }
  func.func @transform_4(%arg0: i32) -> (i32, i32) {
    %c0_i32 = arith.constant 0 : i32
    %c0_i32_0 = arith.constant 0 : i32
    %c0_i32_1 = arith.constant 0 : i32
    return %c0_i32, %c0_i32_0 : i32, i32
  }
  func.func @transform_5(%arg0: i32) -> (i32, i32) {
    %c0_i32 = arith.constant 0 : i32
    %c0_i32_0 = arith.constant 0 : i32
    %c0_i32_1 = arith.constant 0 : i32
    return %c0_i32, %c0_i32_0 : i32, i32
  }
  func.func @transform_6(%arg0: i32) -> (i32, i32) {
    %c0_i32 = arith.constant 0 : i32
    %c0_i32_0 = arith.constant 0 : i32
    %c0_i32_1 = arith.constant 0 : i32
    return %c0_i32, %c0_i32_0 : i32, i32
  }
  func.func @transform_7(%arg0: i32) -> (i32, i32) {
    %c0_i32 = arith.constant 0 : i32
    %c0_i32_0 = arith.constant 0 : i32
    %c0_i32_1 = arith.constant 0 : i32
    return %c0_i32, %c0_i32_0 : i32, i32
  }
  func.func @transform_8(%arg0: i32) -> (i32, i32) {
    %c0_i32 = arith.constant 0 : i32
    %c0_i32_0 = arith.constant 0 : i32
    %c0_i32_1 = arith.constant 0 : i32
    return %c0_i32, %c0_i32_0 : i32, i32
  }
  func.func @transform_9(%arg0: i32) -> (i32, i32) {
    %c0_i32 = arith.constant 0 : i32
    %c0_i32_0 = arith.constant 0 : i32
    %c0_i32_1 = arith.constant 0 : i32
    return %c0_i32, %c0_i32_0 : i32, i32
  }
  func.func @transform_10(%arg0: i32) -> (i32, i32) {
    %c0_i32 = arith.constant 0 : i32
    %c0_i32_0 = arith.constant 0 : i32
    %c0_i32_1 = arith.constant 0 : i32
    return %c0_i32, %c0_i32_0 : i32, i32
  }
  func.func @transform_11(%arg0: i32) -> (i32, i32) {
    %c0_i32 = arith.constant 0 : i32
    %c0_i32_0 = arith.constant 0 : i32
    %c0_i32_1 = arith.constant 0 : i32
    return %c0_i32, %c0_i32_0 : i32, i32
  }
  func.func @transform_12(%arg0: i32) -> (i32, i32) {
    %c0_i32 = arith.constant 0 : i32
    %c0_i32_0 = arith.constant 0 : i32
    %c0_i32_1 = arith.constant 0 : i32
    return %c0_i32, %c0_i32_0 : i32, i32
  }
  func.func @transform_13(%arg0: i32) -> (i32, i32) {
    %c0_i32 = arith.constant 0 : i32
    %c0_i32_0 = arith.constant 0 : i32
    %c0_i32_1 = arith.constant 0 : i32
    return %c0_i32, %c0_i32_0 : i32, i32
  }
  func.func @transform_14(%arg0: i32) -> (i32, i32) {
    %c0_i32 = arith.constant 0 : i32
    %c0_i32_0 = arith.constant 0 : i32
    %c0_i32_1 = arith.constant 0 : i32
    return %c0_i32, %c0_i32_0 : i32, i32
  }
  func.func @transform_15(%arg0: i32) -> (i32, i32) {
    %c0_i32 = arith.constant 0 : i32
    %c0_i32_0 = arith.constant 0 : i32
    %c0_i32_1 = arith.constant 0 : i32
    return %c0_i32, %c0_i32_0 : i32, i32
  }
  func.func @transform_16(%arg0: i32) -> (i32, i32) {
    %c0_i32 = arith.constant 0 : i32
    %c0_i32_0 = arith.constant 0 : i32
    %c0_i32_1 = arith.constant 0 : i32
    return %c0_i32, %c0_i32_0 : i32, i32
  }
  func.func @transform_17(%arg0: i32) -> (i32, i32) {
    %c0_i32 = arith.constant 0 : i32
    %c0_i32_0 = arith.constant 0 : i32
    %c0_i32_1 = arith.constant 0 : i32
    return %c0_i32, %c0_i32_0 : i32, i32
  }
  func.func @transform_18(%arg0: i32) -> (i32, i32) {
    %c0_i32 = arith.constant 0 : i32
    %c0_i32_0 = arith.constant 0 : i32
    %c0_i32_1 = arith.constant 0 : i32
    return %c0_i32, %c0_i32_0 : i32, i32
  }
  func.func @transform_19(%arg0: i32) -> (i32, i32, i32) {
    %c0_i32 = arith.constant 0 : i32
    %c0_i32_0 = arith.constant 0 : i32
    %c0_i32_1 = arith.constant 0 : i32
    return %arg0, %c0_i32, %c0_i32_0 : i32, i32, i32
  }
}

</mosaic_0001>

<llo_original>
// kernel: tpu_custom_call.1
$region0: #{tpu_custom_call.1}
  #allocation0 [shape = 'u32[]', space=smem, size = 0x4, offset = 0x4, fixed_abs, tag = 'smem constant byte address 0x4 - core index']
  #allocation1 [shape = 'u32[144,128]{1,0:T(1,128)}', space=vmem, size = 0x12000, scoped, tag = 'internal scratch']
  %s0 = inlined_call_operand.vmem [shape: f32[2,16,32], index: 0, kind: input, shape index: {}]
  %s1 = inlined_call_operand.hbm [shape: f32[2,1,16], index: 1, kind: input, shape index: {}]
  %s2 = inlined_call_operand.vmem [shape: f32[16,16], index: 2, kind: input, shape index: {}]
  %s3 = inlined_call_operand.vmem [shape: f32[1,32], index: 3, kind: input, shape index: {}]
  %s4 = inlined_call_operand.hbm [shape: f32[1,32], index: 4, kind: input, shape index: {}]
  %s5 = inlined_call_operand.hbm [shape: bf16[32,32], index: 5, kind: input, shape index: {}]
  %s6 = inlined_call_operand.hbm [shape: bf16[32,32], index: 6, kind: input, shape index: {}]
  %s7 = inlined_call_operand.hbm [shape: bf16[32,32], index: 7, kind: input, shape index: {}]
  %s8 = inlined_call_operand.hbm [shape: f32[1,32], index: 8, kind: input, shape index: {}]
  %s9 = inlined_call_operand.hbm [shape: f32[1,32], index: 9, kind: input, shape index: {}]
  %s10 = inlined_call_operand.hbm [shape: f32[1,32], index: 10, kind: input, shape index: {}]
  %s11 = inlined_call_operand.vmem [shape: bf16[32,32], index: 11, kind: input, shape index: {}]
  %s12 = inlined_call_operand.hbm [shape: f32[1,32], index: 12, kind: input, shape index: {}]
  %s13 = inlined_call_operand.hbm [shape: f32[1,32], index: 13, kind: input, shape index: {}]
  %s14 = inlined_call_operand.vmem [shape: f32[1,32], index: 14, kind: input, shape index: {}]
  %s15 = inlined_call_operand.vmem [shape: bf16[32,64], index: 15, kind: input, shape index: {}]
  %s16 = inlined_call_operand.vmem [shape: f32[1,64], index: 16, kind: input, shape index: {}]
  %s17 = inlined_call_operand.vmem [shape: bf16[64,32], index: 17, kind: input, shape index: {}]
  %s18 = inlined_call_operand.vmem [shape: f32[1,32], index: 18, kind: input, shape index: {}]
  %s19 = inlined_call_operand.hbm [shape: f32[2,16,32], index: 19, kind: output, shape index: {}]
  %s20 = sld [smem:[#allocation0]]
  $region149: #{tpu_custom_call.1} parent=0
    _
  %s22 = ssub.s32 1, %s20
  %s23 = scalar_select 0, %s22, %s20
  $region1: #{tpu_custom_call.1} parent=0
    #allocation2 [shape = 'u8[1024]{0}', space=vmem, size = 0x400, scoped, tag = 'input window, operand 1']
    #allocation3 [shape = 's32[2]{0}', space=sflag, size = 0x8, scoped, tag = 'scoped memory for tpu_custom_call.1']
    #allocation4 [shape = 's32[2]{0}', space=sflag, size = 0x8, scoped, tag = 'scoped memory for tpu_custom_call.1']
    #allocation5 [shape = 'u8[512]{0}', space=vmem, size = 0x400, scoped, tag = 'input window, operand 4, single buffered']
    #allocation6 [shape = 's32[1]{0}', space=sflag, size = 0x4, scoped, tag = 'scoped memory for tpu_custom_call.1']
    #allocation7 [shape = 'u8[8192]{0}', space=vmem, size = 0x2000, scoped, tag = 'input window, operand 5, single buffered']
    #allocation8 [shape = 'u8[8192]{0}', space=vmem, size = 0x2000, scoped, tag = 'input window, operand 6, single buffered']
    #allocation9 [shape = 's32[1]{0}', space=sflag, size = 0x4, scoped, tag = 'scoped memory for tpu_custom_call.1']
    #allocation10 [shape = 'u8[8192]{0}', space=vmem, size = 0x2000, scoped, tag = 'input window, operand 7, single buffered']
    #allocation11 [shape = 'u8[512]{0}', space=vmem, size = 0x400, scoped, tag = 'input window, operand 8, single buffered']
    #allocation12 [shape = 's32[1]{0}', space=sflag, size = 0x4, scoped, tag = 'scoped memory for tpu_custom_call.1']
    #allocation13 [shape = 'u8[512]{0}', space=vmem, size = 0x400, scoped, tag = 'input window, operand 9, single buffered']
    #allocation14 [shape = 'u8[512]{0}', space=vmem, size = 0x400, scoped, tag = 'input window, operand 10, single buffered']
    #allocation15 [shape = 's32[1]{0}', space=sflag, size = 0x4, scoped, tag = 'scoped memory for tpu_custom_call.1']
    #allocation16 [shape = 'u8[512]{0}', space=vmem, size = 0x400, scoped, tag = 'input window, operand 12, single buffered']
    #allocation17 [shape = 'u8[512]{0}', space=vmem, size = 0x400, scoped, tag = 'input window, operand 13, single buffered']
    #allocation18 [shape = 's32[1]{0}', space=sflag, size = 0x4, scoped, tag = 'scoped memory for tpu_custom_call.1']
    #allocation19 [shape = 'u8[16384]{0}', space=vmem, size = 0x4000, scoped, tag = 'output window, operand 0']
    %24 = vsyncpa [#allocation3], 0
    %s25 = scalar_lea.sflag [#allocation3], 1
    %26 = vsyncpa %s25, 0
    %27 = vsyncpa [#allocation6], 0
    %28 = vsyncpa [#allocation9], 0
    %29 = vsyncpa [#allocation12], 0
    %30 = vsyncpa [#allocation15], 0
    %31 = vsyncpa [#allocation18], 0
    %32 = vsyncpa [#allocation4], 0
    %s33 = scalar_lea.sflag [#allocation4], 1
    %34 = vsyncpa %s33, 0
    loop: start=0, step=1, limit=4
    $region2: #{tpu_custom_call.1} parent=1 // loop_pre_header
      _
    $region3: #{tpu_custom_call.1} parent=1 // loop_header
      %s36 = sphi 0, %s40
      %p37 = scmp.ge.s32.totalorder %s36, 4
      %s46 = sphi 0, %s48
      %s49 = sphi 0, %s46
      %s50 = sphi 0, %s49
      %s66 = sphi 0, %s50
      %s72 = sphi 0, %s74
      %s75 = sphi 0, %s72
      %s76 = sphi 0, %s75
      %s92 = sphi 0, %s76
      %s96 = sphi 0, %s96
      %s98 = sphi 0, %s96
      %s99 = sphi 0, %s98
      %s113 = sphi 0, %s99
      %s117 = sphi 0, %s117
      %s119 = sphi 0, %s117
      %s120 = sphi 0, %s119
      %s134 = sphi 0, %s120
      %s138 = sphi 0, %s138
      %s140 = sphi 0, %s138
      %s141 = sphi 0, %s140
      %s155 = sphi 0, %s141
      %s159 = sphi 0, %s159
      %s161 = sphi 0, %s159
      %s162 = sphi 0, %s161
      %s176 = sphi 0, %s162
      %s180 = sphi 0, %s180
      %s182 = sphi 0, %s180
      %s183 = sphi 0, %s182
      %s197 = sphi 0, %s183
      %s201 = sphi 0, %s201
      %s203 = sphi 0, %s201
      %s204 = sphi 0, %s203
      %s218 = sphi 0, %s204
      %s222 = sphi 0, %s222
      %s224 = sphi 0, %s222
      %s225 = sphi 0, %s224
      %s239 = sphi 0, %s225
      %s243 = sphi 0, %s243
      %s245 = sphi 0, %s243
      %s246 = sphi 0, %s245
      %s260 = sphi 0, %s246
      %s264 = sphi 0, %s264
      %s266 = sphi 0, %s264
      %s267 = sphi 0, %s266
      %s281 = sphi 0, %s267
      %s285 = sphi 0, %s285
      %s287 = sphi 0, %s285
      %s288 = sphi 0, %s287
      %s302 = sphi 0, %s288
      %s306 = sphi 0, %s306
      %s308 = sphi 0, %s306
      %s309 = sphi 0, %s308
      %s323 = sphi 0, %s309
      %s327 = sphi 0, %s327
      %s329 = sphi 0, %s327
      %s330 = sphi 0, %s329
      %s344 = sphi 0, %s330
      %s348 = sphi 0, %s348
      %s350 = sphi 0, %s348
      %s351 = sphi 0, %s350
      %s365 = sphi 0, %s351
      %s369 = sphi 0, %s369
      %s371 = sphi 0, %s369
      %s372 = sphi 0, %s371
      %s386 = sphi 0, %s372
      %s390 = sphi 0, %s390
      %s392 = sphi 0, %s390
      %s393 = sphi 0, %s392
      %s407 = sphi 0, %s393
      %s411 = sphi 0, %s411
      %s413 = sphi 0, %s411
      %s414 = sphi 0, %s413
      %s428 = sphi 0, %s414
      %s432 = sphi 0, %s432
      %s434 = sphi 0, %s432
      %s435 = sphi 0, %s434
      %s449 = sphi 0, %s435
      %s455 = sphi 0, %s457
      %s458 = sphi 0, %s455
      %s459 = sphi 0, %s458
      %s475 = sphi 0, %s459
    $region4: #{tpu_custom_call.1} parent=1 // loop_header_branch
      %39 = sbr.rel (%p37) target = $region8
    $region5: #{tpu_custom_call.1} parent=1 // loop_body
      %s41 = ssub.s32 %s36, 1
      %s42 = ssub.s32 %s36, 2
      %s43 = sadd.s32 %s36, 1
      %s44 = ssub.s32 %s36, %s43
      %p45 = scmp.eq.s32.totalorder %s44, 0
      %s47 = sadd.s32 %s46, 1
      %s48 = scalar_select %p45, %s46, %s47
      %p51 = pneg %p45
      %p52 = scmp.eq.s32.totalorder %s36, 1
      %p53 = por %p51, %p52
      %p54 = scmp.ne.s32.totalorder %s46, %s49
      %p55 = scmp.eq.s32.totalorder %s36, 0
      %p56 = por %p54, %p55
      %p57 = scmp.ne.s32.totalorder %s46, %s49
      %p58 = scmp.eq.s32.totalorder %s41, 1
      %p59 = por %p57, %p58
      %p60 = scmp.ne.s32.totalorder %s49, %s50
      %p61 = scmp.eq.s32.totalorder %s41, 0
      %p62 = por %p60, %p61
      %p63 = scmp.ne.s32.totalorder %s49, %s50
      %p64 = scmp.eq.s32.totalorder %s42, 1
      %p65 = por %p63, %p64
      %p67 = scmp.ne.s32.totalorder %s50, %s66
      %p68 = scmp.eq.s32.totalorder %s42, 0
      %p69 = por %p67, %p68
      %s70 = ssub.s32 %s36, %s43
      %p71 = scmp.eq.s32.totalorder %s70, 0
      %s73 = sadd.s32 %s72, 1
      %s74 = scalar_select %p71, %s72, %s73
      %p77 = pneg %p71
      %p78 = scmp.eq.s32.totalorder %s36, 1
      %p79 = por %p77, %p78
      %p80 = scmp.ne.s32.totalorder %s72, %s75
      %p81 = scmp.eq.s32.totalorder %s36, 0
      %p82 = por %p80, %p81
      %p83 = scmp.ne.s32.totalorder %s72, %s75
      %p84 = scmp.eq.s32.totalorder %s41, 1
      %p85 = por %p83, %p84
      %p86 = scmp.ne.s32.totalorder %s75, %s76
      %p87 = scmp.eq.s32.totalorder %s41, 0
      %p88 = por %p86, %p87
      %p89 = scmp.ne.s32.totalorder %s75, %s76
      %p90 = scmp.eq.s32.totalorder %s42, 1
      %p91 = por %p89, %p90
      %p93 = scmp.ne.s32.totalorder %s76, %s92
      %p94 = scmp.eq.s32.totalorder %s42, 0
      %p95 = por %p93, %p94
      %s97 = sadd.s32 %s96, 1
      %p100 = scmp.eq.s32.totalorder %s36, 1
      %p101 = scmp.ne.s32.totalorder %s96, %s98
      %p102 = scmp.eq.s32.totalorder %s36, 0
      %p103 = por %p101, %p102
      %p104 = scmp.ne.s32.totalorder %s96, %s98
      %p105 = scmp.eq.s32.totalorder %s41, 1
      %p106 = por %p104, %p105
      %p107 = scmp.ne.s32.totalorder %s98, %s99
      %p108 = scmp.eq.s32.totalorder %s41, 0
      %p109 = por %p107, %p108
      %p110 = scmp.ne.s32.totalorder %s98, %s99
      %p111 = scmp.eq.s32.totalorder %s42, 1
      %p112 = por %p110, %p111
      %p114 = scmp.ne.s32.totalorder %s99, %s113
      %p115 = scmp.eq.s32.totalorder %s42, 0
      %p116 = por %p114, %p115
      %s118 = sadd.s32 %s117, 1
      %p121 = scmp.eq.s32.totalorder %s36, 1
      %p122 = scmp.ne.s32.totalorder %s117, %s119
      %p123 = scmp.eq.s32.totalorder %s36, 0
      %p124 = por %p122, %p123
      %p125 = scmp.ne.s32.totalorder %s117, %s119
      %p126 = scmp.eq.s32.totalorder %s41, 1
      %p127 = por %p125, %p126
      %p128 = scmp.ne.s32.totalorder %s119, %s120
      %p129 = scmp.eq.s32.totalorder %s41, 0
      %p130 = por %p128, %p129
      %p131 = scmp.ne.s32.totalorder %s119, %s120
      %p132 = scmp.eq.s32.totalorder %s42, 1
      %p133 = por %p131, %p132
      %p135 = scmp.ne.s32.totalorder %s120, %s134
      %p136 = scmp.eq.s32.totalorder %s42, 0
      %p137 = por %p135, %p136
      %s139 = sadd.s32 %s138, 1
      %p142 = scmp.eq.s32.totalorder %s36, 1
      %p143 = scmp.ne.s32.totalorder %s138, %s140
      %p144 = scmp.eq.s32.totalorder %s36, 0
      %p145 = por %p143, %p144
      %p146 = scmp.ne.s32.totalorder %s138, %s140
      %p147 = scmp.eq.s32.totalorder %s41, 1
      %p148 = por %p146, %p147
      %p149 = scmp.ne.s32.totalorder %s140, %s141
      %p150 = scmp.eq.s32.totalorder %s41, 0
      %p151 = por %p149, %p150
      %p152 = scmp.ne.s32.totalorder %s140, %s141
      %p153 = scmp.eq.s32.totalorder %s42, 1
      %p154 = por %p152, %p153
      %p156 = scmp.ne.s32.totalorder %s141, %s155
      %p157 = scmp.eq.s32.totalorder %s42, 0
      %p158 = por %p156, %p157
      %s160 = sadd.s32 %s159, 1
      %p163 = scmp.eq.s32.totalorder %s36, 1
      %p164 = scmp.ne.s32.totalorder %s159, %s161
      %p165 = scmp.eq.s32.totalorder %s36, 0
      %p166 = por %p164, %p165
      %p167 = scmp.ne.s32.totalorder %s159, %s161
      %p168 = scmp.eq.s32.totalorder %s41, 1
      %p169 = por %p167, %p168
      %p170 = scmp.ne.s32.totalorder %s161, %s162
      %p171 = scmp.eq.s32.totalorder %s41, 0
      %p172 = por %p170, %p171
      %p173 = scmp.ne.s32.totalorder %s161, %s162
      %p174 = scmp.eq.s32.totalorder %s42, 1
      %p175 = por %p173, %p174
      %p177 = scmp.ne.s32.totalorder %s162, %s176
      %p178 = scmp.eq.s32.totalorder %s42, 0
      %p179 = por %p177, %p178
      %s181 = sadd.s32 %s180, 1
      %p184 = scmp.eq.s32.totalorder %s36, 1
      %p185 = scmp.ne.s32.totalorder %s180, %s182
      %p186 = scmp.eq.s32.totalorder %s36, 0
      %p187 = por %p185, %p186
      %p188 = scmp.ne.s32.totalorder %s180, %s182
      %p189 = scmp.eq.s32.totalorder %s41, 1
      %p190 = por %p188, %p189
      %p191 = scmp.ne.s32.totalorder %s182, %s183
      %p192 = scmp.eq.s32.totalorder %s41, 0
      %p193 = por %p191, %p192
      %p194 = scmp.ne.s32.totalorder %s182, %s183
      %p195 = scmp.eq.s32.totalorder %s42, 1
      %p196 = por %p194, %p195
      %p198 = scmp.ne.s32.totalorder %s183, %s197
      %p199 = scmp.eq.s32.totalorder %s42, 0
      %p200 = por %p198, %p199
      %s202 = sadd.s32 %s201, 1
      %p205 = scmp.eq.s32.totalorder %s36, 1
      %p206 = scmp.ne.s32.totalorder %s201, %s203
      %p207 = scmp.eq.s32.totalorder %s36, 0
      %p208 = por %p206, %p207
      %p209 = scmp.ne.s32.totalorder %s201, %s203
      %p210 = scmp.eq.s32.totalorder %s41, 1
      %p211 = por %p209, %p210
      %p212 = scmp.ne.s32.totalorder %s203, %s204
      %p213 = scmp.eq.s32.totalorder %s41, 0
      %p214 = por %p212, %p213
      %p215 = scmp.ne.s32.totalorder %s203, %s204
      %p216 = scmp.eq.s32.totalorder %s42, 1
      %p217 = por %p215, %p216
      %p219 = scmp.ne.s32.totalorder %s204, %s218
      %p220 = scmp.eq.s32.totalorder %s42, 0
      %p221 = por %p219, %p220
      %s223 = sadd.s32 %s222, 1
      %p226 = scmp.eq.s32.totalorder %s36, 1
      %p227 = scmp.ne.s32.totalorder %s222, %s224
      %p228 = scmp.eq.s32.totalorder %s36, 0
      %p229 = por %p227, %p228
      %p230 = scmp.ne.s32.totalorder %s222, %s224
      %p231 = scmp.eq.s32.totalorder %s41, 1
      %p232 = por %p230, %p231
      %p233 = scmp.ne.s32.totalorder %s224, %s225
      %p234 = scmp.eq.s32.totalorder %s41, 0
      %p235 = por %p233, %p234
      %p236 = scmp.ne.s32.totalorder %s224, %s225
      %p237 = scmp.eq.s32.totalorder %s42, 1
      %p238 = por %p236, %p237
      %p240 = scmp.ne.s32.totalorder %s225, %s239
      %p241 = scmp.eq.s32.totalorder %s42, 0
      %p242 = por %p240, %p241
      %s244 = sadd.s32 %s243, 1
      %p247 = scmp.eq.s32.totalorder %s36, 1
      %p248 = scmp.ne.s32.totalorder %s243, %s245
      %p249 = scmp.eq.s32.totalorder %s36, 0
      %p250 = por %p248, %p249
      %p251 = scmp.ne.s32.totalorder %s243, %s245
      %p252 = scmp.eq.s32.totalorder %s41, 1
      %p253 = por %p251, %p252
      %p254 = scmp.ne.s32.totalorder %s245, %s246
      %p255 = scmp.eq.s32.totalorder %s41, 0
      %p256 = por %p254, %p255
      %p257 = scmp.ne.s32.totalorder %s245, %s246
      %p258 = scmp.eq.s32.totalorder %s42, 1
      %p259 = por %p257, %p258
      %p261 = scmp.ne.s32.totalorder %s246, %s260
      %p262 = scmp.eq.s32.totalorder %s42, 0
      %p263 = por %p261, %p262
      %s265 = sadd.s32 %s264, 1
      %p268 = scmp.eq.s32.totalorder %s36, 1
      %p269 = scmp.ne.s32.totalorder %s264, %s266
      %p270 = scmp.eq.s32.totalorder %s36, 0
      %p271 = por %p269, %p270
      %p272 = scmp.ne.s32.totalorder %s264, %s266
      %p273 = scmp.eq.s32.totalorder %s41, 1
      %p274 = por %p272, %p273
      %p275 = scmp.ne.s32.totalorder %s266, %s267
      %p276 = scmp.eq.s32.totalorder %s41, 0
      %p277 = por %p275, %p276
      %p278 = scmp.ne.s32.totalorder %s266, %s267
      %p279 = scmp.eq.s32.totalorder %s42, 1
      %p280 = por %p278, %p279
      %p282 = scmp.ne.s32.totalorder %s267, %s281
      %p283 = scmp.eq.s32.totalorder %s42, 0
      %p284 = por %p282, %p283
      %s286 = sadd.s32 %s285, 1
      %p289 = scmp.eq.s32.totalorder %s36, 1
      %p290 = scmp.ne.s32.totalorder %s285, %s287
      %p291 = scmp.eq.s32.totalorder %s36, 0
      %p292 = por %p290, %p291
      %p293 = scmp.ne.s32.totalorder %s285, %s287
      %p294 = scmp.eq.s32.totalorder %s41, 1
      %p295 = por %p293, %p294
      %p296 = scmp.ne.s32.totalorder %s287, %s288
      %p297 = scmp.eq.s32.totalorder %s41, 0
      %p298 = por %p296, %p297
      %p299 = scmp.ne.s32.totalorder %s287, %s288
      %p300 = scmp.eq.s32.totalorder %s42, 1
      %p301 = por %p299, %p300
      %p303 = scmp.ne.s32.totalorder %s288, %s302
      %p304 = scmp.eq.s32.totalorder %s42, 0
      %p305 = por %p303, %p304
      %s307 = sadd.s32 %s306, 1
      %p310 = scmp.eq.s32.totalorder %s36, 1
      %p311 = scmp.ne.s32.totalorder %s306, %s308
      %p312 = scmp.eq.s32.totalorder %s36, 0
      %p313 = por %p311, %p312
      %p314 = scmp.ne.s32.totalorder %s306, %s308
      %p315 = scmp.eq.s32.totalorder %s41, 1
      %p316 = por %p314, %p315
      %p317 = scmp.ne.s32.totalorder %s308, %s309
      %p318 = scmp.eq.s32.totalorder %s41, 0
      %p319 = por %p317, %p318
      %p320 = scmp.ne.s32.totalorder %s308, %s309
      %p321 = scmp.eq.s32.totalorder %s42, 1
      %p322 = por %p320, %p321
      %p324 = scmp.ne.s32.totalorder %s309, %s323
      %p325 = scmp.eq.s32.totalorder %s42, 0
      %p326 = por %p324, %p325
      %s328 = sadd.s32 %s327, 1
      %p331 = scmp.eq.s32.totalorder %s36, 1
      %p332 = scmp.ne.s32.totalorder %s327, %s329
      %p333 = scmp.eq.s32.totalorder %s36, 0
      %p334 = por %p332, %p333
      %p335 = scmp.ne.s32.totalorder %s327, %s329
      %p336 = scmp.eq.s32.totalorder %s41, 1
      %p337 = por %p335, %p336
      %p338 = scmp.ne.s32.totalorder %s329, %s330
      %p339 = scmp.eq.s32.totalorder %s41, 0
      %p340 = por %p338, %p339
      %p341 = scmp.ne.s32.totalorder %s329, %s330
      %p342 = scmp.eq.s32.totalorder %s42, 1
      %p343 = por %p341, %p342
      %p345 = scmp.ne.s32.totalorder %s330, %s344
      %p346 = scmp.eq.s32.totalorder %s42, 0
      %p347 = por %p345, %p346
      %s349 = sadd.s32 %s348, 1
      %p352 = scmp.eq.s32.totalorder %s36, 1
      %p353 = scmp.ne.s32.totalorder %s348, %s350
      %p354 = scmp.eq.s32.totalorder %s36, 0
      %p355 = por %p353, %p354
      %p356 = scmp.ne.s32.totalorder %s348, %s350
      %p357 = scmp.eq.s32.totalorder %s41, 1
      %p358 = por %p356, %p357
      %p359 = scmp.ne.s32.totalorder %s350, %s351
      %p360 = scmp.eq.s32.totalorder %s41, 0
      %p361 = por %p359, %p360
      %p362 = scmp.ne.s32.totalorder %s350, %s351
      %p363 = scmp.eq.s32.totalorder %s42, 1
      %p364 = por %p362, %p363
      %p366 = scmp.ne.s32.totalorder %s351, %s365
      %p367 = scmp.eq.s32.totalorder %s42, 0
      %p368 = por %p366, %p367
      %s370 = sadd.s32 %s369, 1
      %p373 = scmp.eq.s32.totalorder %s36, 1
      %p374 = scmp.ne.s32.totalorder %s369, %s371
      %p375 = scmp.eq.s32.totalorder %s36, 0
      %p376 = por %p374, %p375
      %p377 = scmp.ne.s32.totalorder %s369, %s371
      %p378 = scmp.eq.s32.totalorder %s41, 1
      %p379 = por %p377, %p378
      %p380 = scmp.ne.s32.totalorder %s371, %s372
      %p381 = scmp.eq.s32.totalorder %s41, 0
      %p382 = por %p380, %p381
      %p383 = scmp.ne.s32.totalorder %s371, %s372
      %p384 = scmp.eq.s32.totalorder %s42, 1
      %p385 = por %p383, %p384
      %p387 = scmp.ne.s32.totalorder %s372, %s386
      %p388 = scmp.eq.s32.totalorder %s42, 0
      %p389 = por %p387, %p388
      %s391 = sadd.s32 %s390, 1
      %p394 = scmp.eq.s32.totalorder %s36, 1
      %p395 = scmp.ne.s32.totalorder %s390, %s392
      %p396 = scmp.eq.s32.totalorder %s36, 0
      %p397 = por %p395, %p396
      %p398 = scmp.ne.s32.totalorder %s390, %s392
      %p399 = scmp.eq.s32.totalorder %s41, 1
      %p400 = por %p398, %p399
      %p401 = scmp.ne.s32.totalorder %s392, %s393
      %p402 = scmp.eq.s32.totalorder %s41, 0
      %p403 = por %p401, %p402
      %p404 = scmp.ne.s32.totalorder %s392, %s393
      %p405 = scmp.eq.s32.totalorder %s42, 1
      %p406 = por %p404, %p405
      %p408 = scmp.ne.s32.totalorder %s393, %s407
      %p409 = scmp.eq.s32.totalorder %s42, 0
      %p410 = por %p408, %p409
      %s412 = sadd.s32 %s411, 1
      %p415 = scmp.eq.s32.totalorder %s36, 1
      %p416 = scmp.ne.s32.totalorder %s411, %s413
      %p417 = scmp.eq.s32.totalorder %s36, 0
      %p418 = por %p416, %p417
      %p419 = scmp.ne.s32.totalorder %s411, %s413
      %p420 = scmp.eq.s32.totalorder %s41, 1
      %p421 = por %p419, %p420
      %p422 = scmp.ne.s32.totalorder %s413, %s414
      %p423 = scmp.eq.s32.totalorder %s41, 0
      %p424 = por %p422, %p423
      %p425 = scmp.ne.s32.totalorder %s413, %s414
      %p426 = scmp.eq.s32.totalorder %s42, 1
      %p427 = por %p425, %p426
      %p429 = scmp.ne.s32.totalorder %s414, %s428
      %p430 = scmp.eq.s32.totalorder %s42, 0
      %p431 = por %p429, %p430
      %s433 = sadd.s32 %s432, 1
      %p436 = scmp.eq.s32.totalorder %s36, 1
      %p437 = scmp.ne.s32.totalorder %s432, %s434
      %p438 = scmp.eq.s32.totalorder %s36, 0
      %p439 = por %p437, %p438
      %p440 = scmp.ne.s32.totalorder %s432, %s434
      %p441 = scmp.eq.s32.totalorder %s41, 1
      %p442 = por %p440, %p441
      %p443 = scmp.ne.s32.totalorder %s434, %s435
      %p444 = scmp.eq.s32.totalorder %s41, 0
      %p445 = por %p443, %p444
      %p446 = scmp.ne.s32.totalorder %s434, %s435
      %p447 = scmp.eq.s32.totalorder %s42, 1
      %p448 = por %p446, %p447
      %p450 = scmp.ne.s32.totalorder %s435, %s449
      %p451 = scmp.eq.s32.totalorder %s42, 0
      %p452 = por %p450, %p451
      %s453 = ssub.s32 %s36, %s43
      %p454 = scmp.eq.s32.totalorder %s453, 0
      %s456 = sadd.s32 %s455, 1
      %s457 = scalar_select %p454, %s455, %s456
      %p460 = pneg %p454
      %p461 = scmp.eq.s32.totalorder %s36, 1
      %p462 = por %p460, %p461
      %p463 = scmp.ne.s32.totalorder %s455, %s458
      %p464 = scmp.eq.s32.totalorder %s36, 0
      %p465 = por %p463, %p464
      %p466 = scmp.ne.s32.totalorder %s455, %s458
      %p467 = scmp.eq.s32.totalorder %s41, 1
      %p468 = por %p466, %p467
      %p469 = scmp.ne.s32.totalorder %s458, %s459
      %p470 = scmp.eq.s32.totalorder %s41, 0
      %p471 = por %p469, %p470
      %p472 = scmp.ne.s32.totalorder %s458, %s459
      %p473 = scmp.eq.s32.totalorder %s42, 1
      %p474 = por %p472, %p473
      %p476 = scmp.ne.s32.totalorder %s459, %s475
      %p477 = scmp.eq.s32.totalorder %s42, 0
      %p478 = por %p476, %p477
      %p479 = scmp.le.s32.totalorder 1, %s36
      %p480 = scmp.lt.s32.totalorder %s36, 3
      %p481 = pnand %p479, %p480
      %p482 = pneg %p481
      // Predicated region
      $region9: #{tpu_custom_call.1} parent=5 // pred_check
        _
      $region10: #{tpu_custom_call.1} parent=5 // pred_check_branch
        %484 = sbr.rel (%p481) target = $region12
      $region11: #{tpu_custom_call.1} parent=5 // pred_region
        %s485 = ssub.s32 %s36, 1
        // Predicated region
        $region13: #{tpu_custom_call.1} parent=11 // pred_check
          %p486 = pneg %p109
        $region14: #{tpu_custom_call.1} parent=11 // pred_check_branch
          %488 = sbr.rel (%p486) target = $region16
        $region15: #{tpu_custom_call.1} parent=11 // pred_region
          _
        $region16: #{tpu_custom_call.1} parent=11 // pred_fallthru
          _
        // Predicated region
        $region17: #{tpu_custom_call.1} parent=11 // pred_check
          %p489 = pneg %p130
        $region18: #{tpu_custom_call.1} parent=11 // pred_check_branch
          %491 = sbr.rel (%p489) target = $region20
        $region19: #{tpu_custom_call.1} parent=11 // pred_region
          _
        $region20: #{tpu_custom_call.1} parent=11 // pred_fallthru
          _
        // Predicated region
        $region21: #{tpu_custom_call.1} parent=11 // pred_check
          %p492 = pneg %p151
        $region22: #{tpu_custom_call.1} parent=11 // pred_check_branch
          %494 = sbr.rel (%p492) target = $region24
        $region23: #{tpu_custom_call.1} parent=11 // pred_region
          %s496 = ssub.s32 16, 16
          %497 = vsyncadd [#allocation6], %s496
          %s499 = sshll.u32 [#allocation5], 4
          %s500 = int_to_ptr.vmem [resolvable:$true] %s499
          %502 = dma.hbm_to_vmem [thread:$0]  %s4, 16, %s500, [#allocation6]
        $region24: #{tpu_custom_call.1} parent=11 // pred_fallthru
          _
        // Predicated region
        $region25: #{tpu_custom_call.1} parent=11 // pred_check
          %p503 = pneg %p172
        $region26: #{tpu_custom_call.1} parent=11 // pred_check_branch
          %505 = sbr.rel (%p503) target = $region28
        $region27: #{tpu_custom_call.1} parent=11 // pred_region
          %s507 = ssub.s32 256, 256
          %508 = vsyncadd [#allocation6], %s507
          %s509 = sshll.u32 [#allocation7], 4
          %s510 = int_to_ptr.vmem [resolvable:$true] %s509
          %515 = dma.hbm_to_vmem [thread:$0]  %s5, 256, %s510, [#allocation6], 64, 64, 4
        $region28: #{tpu_custom_call.1} parent=11 // pred_fallthru
          _
        // Predicated region
        $region29: #{tpu_custom_call.1} parent=11 // pred_check
          %p516 = pneg %p193
        $region30: #{tpu_custom_call.1} parent=11 // pred_check_branch
          %518 = sbr.rel (%p516) target = $region32
        $region31: #{tpu_custom_call.1} parent=11 // pred_region
          %s520 = ssub.s32 256, 256
          %521 = vsyncadd [#allocation9], %s520
          %s522 = sshll.u32 [#allocation8], 4
          %s523 = int_to_ptr.vmem [resolvable:$true] %s522
          %528 = dma.hbm_to_vmem [thread:$0]  %s6, 256, %s523, [#allocation9], 64, 64, 4
        $region32: #{tpu_custom_call.1} parent=11 // pred_fallthru
          _
        // Predicated region
        $region33: #{tpu_custom_call.1} parent=11 // pred_check
          %p529 = pneg %p214
        $region34: #{tpu_custom_call.1} parent=11 // pred_check_branch
          %531 = sbr.rel (%p529) target = $region36
        $region35: #{tpu_custom_call.1} parent=11 // pred_region
          %s533 = ssub.s32 256, 256
          %534 = vsyncadd [#allocation9], %s533
          %s535 = sshll.u32 [#allocation10], 4
          %s536 = int_to_ptr.vmem [resolvable:$true] %s535
          %541 = dma.hbm_to_vmem [thread:$0]  %s7, 256, %s536, [#allocation9], 64, 64, 4
        $region36: #{tpu_custom_call.1} parent=11 // pred_fallthru
          _
        // Predicated region
        $region37: #{tpu_custom_call.1} parent=11 // pred_check
          %p542 = pneg %p235
        $region38: #{tpu_custom_call.1} parent=11 // pred_check_branch
          %544 = sbr.rel (%p542) target = $region40
        $region39: #{tpu_custom_call.1} parent=11 // pred_region
          %s546 = ssub.s32 16, 16
          %547 = vsyncadd [#allocation12], %s546
          %s549 = sshll.u32 [#allocation11], 4
          %s550 = int_to_ptr.vmem [resolvable:$true] %s549
          %552 = dma.hbm_to_vmem [thread:$0]  %s8, 16, %s550, [#allocation12]
        $region40: #{tpu_custom_call.1} parent=11 // pred_fallthru
          _
        // Predicated region
        $region41: #{tpu_custom_call.1} parent=11 // pred_check
          %p553 = pneg %p256
        $region42: #{tpu_custom_call.1} parent=11 // pred_check_branch
          %555 = sbr.rel (%p553) target = $region44
        $region43: #{tpu_custom_call.1} parent=11 // pred_region
          %s557 = ssub.s32 16, 16
          %558 = vsyncadd [#allocation12], %s557
          %s560 = sshll.u32 [#allocation13], 4
          %s561 = int_to_ptr.vmem [resolvable:$true] %s560
          %563 = dma.hbm_to_vmem [thread:$0]  %s9, 16, %s561, [#allocation12]
        $region44: #{tpu_custom_call.1} parent=11 // pred_fallthru
          _
        // Predicated region
        $region45: #{tpu_custom_call.1} parent=11 // pred_check
          %p564 = pneg %p277
        $region46: #{tpu_custom_call.1} parent=11 // pred_check_branch
          %566 = sbr.rel (%p564) target = $region48
        $region47: #{tpu_custom_call.1} parent=11 // pred_region
          %s568 = ssub.s32 16, 16
          %569 = vsyncadd [#allocation15], %s568
          %s571 = sshll.u32 [#allocation14], 4
          %s572 = int_to_ptr.vmem [resolvable:$true] %s571
          %574 = dma.hbm_to_vmem [thread:$0]  %s10, 16, %s572, [#allocation15]
        $region48: #{tpu_custom_call.1} parent=11 // pred_fallthru
          _
        // Predicated region
        $region49: #{tpu_custom_call.1} parent=11 // pred_check
          %p575 = pneg %p298
        $region50: #{tpu_custom_call.1} parent=11 // pred_check_branch
          %577 = sbr.rel (%p575) target = $region52
        $region51: #{tpu_custom_call.1} parent=11 // pred_region
          _
        $region52: #{tpu_custom_call.1} parent=11 // pred_fallthru
          _
        // Predicated region
        $region53: #{tpu_custom_call.1} parent=11 // pred_check
          %p578 = pneg %p319
        $region54: #{tpu_custom_call.1} parent=11 // pred_check_branch
          %580 = sbr.rel (%p578) target = $region56
        $region55: #{tpu_custom_call.1} parent=11 // pred_region
          %s582 = ssub.s32 16, 16
          %583 = vsyncadd [#allocation15], %s582
          %s585 = sshll.u32 [#allocation16], 4
          %s586 = int_to_ptr.vmem [resolvable:$true] %s585
          %588 = dma.hbm_to_vmem [thread:$0]  %s12, 16, %s586, [#allocation15]
        $region56: #{tpu_custom_call.1} parent=11 // pred_fallthru
          _
        // Predicated region
        $region57: #{tpu_custom_call.1} parent=11 // pred_check
          %p589 = pneg %p340
        $region58: #{tpu_custom_call.1} parent=11 // pred_check_branch
          %591 = sbr.rel (%p589) target = $region60
        $region59: #{tpu_custom_call.1} parent=11 // pred_region
          %s593 = ssub.s32 16, 16
          %594 = vsyncadd [#allocation18], %s593
          %s596 = sshll.u32 [#allocation17], 4
          %s597 = int_to_ptr.vmem [resolvable:$true] %s596
          %599 = dma.hbm_to_vmem [thread:$0]  %s13, 16, %s597, [#allocation18]
        $region60: #{tpu_custom_call.1} parent=11 // pred_fallthru
          _
        // Predicated region
        $region61: #{tpu_custom_call.1} parent=11 // pred_check
          %p600 = pneg %p361
        $region62: #{tpu_custom_call.1} parent=11 // pred_check_branch
          %602 = sbr.rel (%p600) target = $region64
        $region63: #{tpu_custom_call.1} parent=11 // pred_region
          _
        $region64: #{tpu_custom_call.1} parent=11 // pred_fallthru
          _
        // Predicated region
        $region65: #{tpu_custom_call.1} parent=11 // pred_check
          %p603 = pneg %p382
        $region66: #{tpu_custom_call.1} parent=11 // pred_check_branch
          %605 = sbr.rel (%p603) target = $region68
        $region67: #{tpu_custom_call.1} parent=11 // pred_region
          _
        $region68: #{tpu_custom_call.1} parent=11 // pred_fallthru
          _
        // Predicated region
        $region69: #{tpu_custom_call.1} parent=11 // pred_check
          %p606 = pneg %p403
        $region70: #{tpu_custom_call.1} parent=11 // pred_check_branch
          %608 = sbr.rel (%p606) target = $region72
        $region71: #{tpu_custom_call.1} parent=11 // pred_region
          _
        $region72: #{tpu_custom_call.1} parent=11 // pred_fallthru
          _
        // Predicated region
        $region73: #{tpu_custom_call.1} parent=11 // pred_check
          %p609 = pneg %p424
        $region74: #{tpu_custom_call.1} parent=11 // pred_check_branch
          %611 = sbr.rel (%p609) target = $region76
        $region75: #{tpu_custom_call.1} parent=11 // pred_region
          _
        $region76: #{tpu_custom_call.1} parent=11 // pred_fallthru
          _
        // Predicated region
        $region77: #{tpu_custom_call.1} parent=11 // pred_check
          %p612 = pneg %p445
        $region78: #{tpu_custom_call.1} parent=11 // pred_check_branch
          %614 = sbr.rel (%p612) target = $region80
        $region79: #{tpu_custom_call.1} parent=11 // pred_region
          _
        $region80: #{tpu_custom_call.1} parent=11 // pred_fallthru
          _
      $region12: #{tpu_custom_call.1} parent=5 // pred_fallthru
        _
      %p615 = scmp.lt.s32.totalorder %s36, 2
      // Predicated region
      $region81: #{tpu_custom_call.1} parent=5 // pred_check
        %p616 = pneg %p615
      $region82: #{tpu_custom_call.1} parent=5 // pred_check_branch
        %618 = sbr.rel (%p616) target = $region84
      $region83: #{tpu_custom_call.1} parent=5 // pred_region
        // Predicated region
        $region85: #{tpu_custom_call.1} parent=83 // pred_check
          %p619 = pneg %p56
        $region86: #{tpu_custom_call.1} parent=83 // pred_check_branch
          %621 = sbr.rel (%p619) target = $region88
        $region87: #{tpu_custom_call.1} parent=83 // pred_region
          %p622 = scmp.lt.s32.totalorder %s36, 1
          %s623 = scalar_select %p622, %s36, 1
          %s624 = smul.addr %s623, 2
          %s625 = smul.addr %s624, 8
          %s626 = scalar_lea.vmem %s0, %s625
        $region88: #{tpu_custom_call.1} parent=83 // pred_fallthru
          _
        // Predicated region
        $region89: #{tpu_custom_call.1} parent=83 // pred_check
          %p627 = pneg %p82
        $region90: #{tpu_custom_call.1} parent=83 // pred_check_branch
          %629 = sbr.rel (%p627) target = $region92
        $region91: #{tpu_custom_call.1} parent=83 // pred_region
          %s630 = sand.u32 %s72, 1
          %s631 = scalar_lea.sflag [#allocation3], %s630
          %s632 = sand.u32 %s72, 1
          %s633 = scalar_lea.vmem [#allocation2], %s632
          %s635 = ssub.s32 16, 16
          %636 = vsyncadd %s631, %s635
          %s637 = smul.addr %s36, 16
          %s638 = scalar_lea.hbm %s1, %s637
          %s640 = sshll.u32 %s633, 4
          %s641 = int_to_ptr.vmem [resolvable:$true] %s640
          %643 = dma.hbm_to_vmem [thread:$0]  %s638, 16, %s641, %s631
        $region92: #{tpu_custom_call.1} parent=83 // pred_fallthru
          _
      $region84: #{tpu_custom_call.1} parent=5 // pred_fallthru
        _
      %p644 = scmp.le.s32.totalorder 1, %s36
      %p645 = scmp.lt.s32.totalorder %s36, 3
      %p646 = pnand %p644, %p645
      %p647 = pneg %p646
      // Predicated region
      $region93: #{tpu_custom_call.1} parent=5 // pred_check
        _
      $region94: #{tpu_custom_call.1} parent=5 // pred_check_branch
        %649 = sbr.rel (%p646) target = $region96
      $region95: #{tpu_custom_call.1} parent=5 // pred_region
        %s650 = ssub.s32 %s36, 1
        %s651 = sand.u32 %s75, 1
        %s652 = scalar_lea.sflag [#allocation3], %s651
        %s653 = sand.u32 %s75, 1
        %s654 = scalar_lea.vmem [#allocation2], %s653
        // Predicated region
        $region97: #{tpu_custom_call.1} parent=95 // pred_check
          %p655 = pneg %p88
        $region98: #{tpu_custom_call.1} parent=95 // pred_check_branch
          %657 = sbr.rel (%p655) target = $region100
        $region99: #{tpu_custom_call.1} parent=95 // pred_region
          %658 = dma.done %s652, 16
        $region100: #{tpu_custom_call.1} parent=95 // pred_fallthru
          _
        // Predicated region
        $region101: #{tpu_custom_call.1} parent=95 // pred_check
          %p659 = pneg %p151
        $region102: #{tpu_custom_call.1} parent=95 // pred_check_branch
          %661 = sbr.rel (%p659) target = $region104
        $region103: #{tpu_custom_call.1} parent=95 // pred_region
          %662 = dma.done [#allocation6], 16
        $region104: #{tpu_custom_call.1} parent=95 // pred_fallthru
          _
        // Predicated region
        $region105: #{tpu_custom_call.1} parent=95 // pred_check
          %p663 = pneg %p172
        $region106: #{tpu_custom_call.1} parent=95 // pred_check_branch
          %665 = sbr.rel (%p663) target = $region108
        $region107: #{tpu_custom_call.1} parent=95 // pred_region
          %666 = dma.done [#allocation6], 256
        $region108: #{tpu_custom_call.1} parent=95 // pred_fallthru
          _
        // Predicated region
        $region109: #{tpu_custom_call.1} parent=95 // pred_check
          %p667 = pneg %p193
        $region110: #{tpu_custom_call.1} parent=95 // pred_check_branch
          %669 = sbr.rel (%p667) target = $region112
        $region111: #{tpu_custom_call.1} parent=95 // pred_region
          %670 = dma.done [#allocation9], 256
        $region112: #{tpu_custom_call.1} parent=95 // pred_fallthru
          _
        // Predicated region
        $region113: #{tpu_custom_call.1} parent=95 // pred_check
          %p671 = pneg %p214
        $region114: #{tpu_custom_call.1} parent=95 // pred_check_branch
          %673 = sbr.rel (%p671) target = $region116
        $region115: #{tpu_custom_call.1} parent=95 // pred_region
          %674 = dma.done [#allocation9], 256
        $region116: #{tpu_custom_call.1} parent=95 // pred_fallthru
          _
        // Predicated region
        $region117: #{tpu_custom_call.1} parent=95 // pred_check
          %p675 = pneg %p235
        $region118: #{tpu_custom_call.1} parent=95 // pred_check_branch
          %677 = sbr.rel (%p675) target = $region120
        $region119: #{tpu_custom_call.1} parent=95 // pred_region
          %678 = dma.done [#allocation12], 16
        $region120: #{tpu_custom_call.1} parent=95 // pred_fallthru
          _
        // Predicated region
        $region121: #{tpu_custom_call.1} parent=95 // pred_check
          %p679 = pneg %p256
        $region122: #{tpu_custom_call.1} parent=95 // pred_check_branch
          %681 = sbr.rel (%p679) target = $region124
        $region123: #{tpu_custom_call.1} parent=95 // pred_region
          %682 = dma.done [#allocation12], 16
        $region124: #{tpu_custom_call.1} parent=95 // pred_fallthru
          _
        // Predicated region
        $region125: #{tpu_custom_call.1} parent=95 // pred_check
          %p683 = pneg %p277
        $region126: #{tpu_custom_call.1} parent=95 // pred_check_branch
          %685 = sbr.rel (%p683) target = $region128
        $region127: #{tpu_custom_call.1} parent=95 // pred_region
          %686 = dma.done [#allocation15], 16
        $region128: #{tpu_custom_call.1} parent=95 // pred_fallthru
          _
        // Predicated region
        $region129: #{tpu_custom_call.1} parent=95 // pred_check
          %p687 = pneg %p319
        $region130: #{tpu_custom_call.1} parent=95 // pred_check_branch
          %689 = sbr.rel (%p687) target = $region132
        $region131: #{tpu_custom_call.1} parent=95 // pred_region
          %690 = dma.done [#allocation15], 16
        $region132: #{tpu_custom_call.1} parent=95 // pred_fallthru
          _
        // Predicated region
        $region133: #{tpu_custom_call.1} parent=95 // pred_check
          %p691 = pneg %p340
        $region134: #{tpu_custom_call.1} parent=95 // pred_check_branch
          %693 = sbr.rel (%p691) target = $region136
        $region135: #{tpu_custom_call.1} parent=95 // pred_region
          %694 = dma.done [#allocation18], 16
        $region136: #{tpu_custom_call.1} parent=95 // pred_fallthru
          _
        %p695 = scmp.lt.s32.totalorder %s41, 1
        %s696 = scalar_select %p695, %s41, 1
        %s697 = smul.addr %s696, 2
        %s698 = smul.addr %s697, 8
        %s699 = scalar_lea.vmem %s0, %s698
        %p700 = pneg %p62
        %p701 = pneg %p59
        %s702 = sand.u32 %s75, 1
        %s703 = scalar_lea.sflag [#allocation3], %s702
        %s704 = sand.u32 %s75, 1
        %s705 = scalar_lea.vmem [#allocation2], %s704
        %p706 = pneg %p88
        %p707 = pneg %p85
        %p708 = pneg %p109
        %p709 = pneg %p106
        %p710 = pneg %p130
        %p711 = pneg %p127
        %p712 = pneg %p151
        %p713 = pneg %p148
        %p714 = pneg %p172
        %p715 = pneg %p169
        %p716 = pneg %p193
        %p717 = pneg %p190
        %p718 = pneg %p214
        %p719 = pneg %p211
        %p720 = pneg %p235
        %p721 = pneg %p232
        %p722 = pneg %p256
        %p723 = pneg %p253
        %p724 = pneg %p277
        %p725 = pneg %p274
        %p726 = pneg %p298
        %p727 = pneg %p295
        %p728 = pneg %p319
        %p729 = pneg %p316
        %p730 = pneg %p340
        %p731 = pneg %p337
        %p732 = pneg %p361
        %p733 = pneg %p358
        %p734 = pneg %p382
        %p735 = pneg %p379
        %p736 = pneg %p403
        %p737 = pneg %p400
        %p738 = pneg %p424
        %p739 = pneg %p421
        %p740 = pneg %p445
        %p741 = pneg %p442
        %p742 = pneg %p471
        %p743 = pneg %p468
        %s744 = sand.u32 %s458, 1
        %s745 = scalar_lea.sflag [#allocation4], %s744
        %s746 = sand.u32 %s458, 1
        %s747 = smul.addr %s746, 16
        %s748 = scalar_lea.vmem [#allocation19], %s747
        %p749 = scmp.lt.s32.totalorder %s41, 1
        %s750 = scalar_select %p749, %s41, 1
        %s751 = smul.addr %s750, 2
        %s752 = smul.addr %s751, 8
        %s753 = scalar_lea.vmem %s0, %s752
        %v755 = vld [vmem:[%s753] sm:$0xff]
        %v756 = vld [vmem:[%s753 + $0x8] sm:$0xff]
        %vm757 = vcmask 261120
        %v758 = vsel %vm757, %v755, 0.0
        %759 = vadd.xlane.f32.xlu0 %v758
        %v760 = vpop.xlane.xlu0 %759
        %v761 = vsel %vm757, %v756, 0.0
        %762 = vadd.xlane.f32.xlu0 %v761
        %v763 = vpop.xlane.xlu0 %762
        %v764 = vrcp.pop 32.0
        %v765 = vmul.f32 %v760, %v764
        %v766 = vmul.f32 %v763, %v764
        %v767 = vsub.f32 %v755, %v765
        %v768 = vsub.f32 %v756, %v766
        %v769 = vmul.f32 %v767, %v767
        %v770 = vmul.f32 %v768, %v768
        %v771 = vsel %vm757, %v769, 0.0
        %772 = vadd.xlane.f32.xlu0 %v771
        %v773 = vpop.xlane.xlu0 %772
        %v774 = vsel %vm757, %v770, 0.0
        %775 = vadd.xlane.f32.xlu0 %v774
        %v776 = vpop.xlane.xlu0 %775
        %v777 = vmul.f32 %v773, %v764
        %v778 = vmul.f32 %v776, %v764
        %v779 = vadd.f32 %v777, 1e-05
        %v780 = vadd.f32 %v778, 1e-05
        %v781 = vrsqrt.pop %v779
        %v782 = vrsqrt.pop %v780
        %v783 = vmul.f32 %v767, %v781
        %v784 = vmul.f32 %v768, %v782
        %v785 = vld [vmem:[%s3] sm:$0x1]
        %v787 = vlaneseq
        %v788 = vshrl.u32 %v787, 7
        %v789 = vsub.s32 0, %v788
        %v790 = vrot.slane %v785, %v789
        %v792 = vmul.f32 %v783, %v790
        %v793 = vmul.f32 %v784, %v790
        %v794 = vld [vmem:[#allocation5] sm:$0x1]
        %v796 = vlaneseq
        %v797 = vshrl.u32 %v796, 7
        %v798 = vsub.s32 0, %v797
        %v799 = vrot.slane %v794, %v798
        %v801 = vadd.f32 %v792, %v799
        %v802 = vadd.f32 %v793, %v799
        %v803 = vpack.c.bf16 %v802, %v801
        %v804 = vld [vmem:[#allocation7] sm:$0xf]
        %v805 = vld [vmem:[#allocation7 + $0x4] sm:$0xf]
        %v806 = vld [vmem:[#allocation7 + $0x8] sm:$0xf]
        %v807 = vld [vmem:[#allocation7 + $0xc] sm:$0xf]
        %v808 = vld [vmem:[#allocation11] sm:$0x1]
        %v810 = vlaneseq
        %v811 = vshrl.u32 %v810, 7
        %v812 = vsub.s32 0, %v811
        %v813 = vrot.slane %v808, %v812
        %v819 = vunpack.c.l.b16 %v804
        %v820 = vunpack.c.l.b16 %v805
        %v821 = vunpack.c.l.b16 %v806
        %v822 = vunpack.c.l.b16 %v807
        %v823 = vpack.c.b16 %v820, %v819
        %v824 = vpack.c.b16 %v822, %v821
        %v828 = vsel %vm757, %v803, 0
        %830 = vmatprep.subr.bf16.mxu0 0
        %831 = vmatpush1.bf16.msra.mxu0 %v823
        %832 = vmatprep.subr.bf16.mxu0 0
        %833 = vmatpush1.bf16.msra.mxu0 %v824
        %834 = vmatprep.subr.bf16.mxu0 0
        %835 = vmatpush1.bf16.msra.mxu0 0
        %836 = vmatprep.subr.bf16.mxu0 0
        %837 = vmatpush1.bf16.msra.mxu0 0
        %838 = vmatprep.subr.bf16.mxu0 0
        %839 = vmatpush1.bf16.msra.mxu0 0
        %840 = vmatprep.subr.bf16.mxu0 0
        %841 = vmatpush1.bf16.msra.mxu0 0
        %842 = vmatprep.subr.bf16.mxu0 0
        %843 = vmatpush1.bf16.msra.mxu0 0
        %844 = vmatprep.subr.bf16.mxu0 0
        %845 = vmatpush1.bf16.msra.mxu0 0
        %846 = vmatprep.subr.bf16.mxu0 0
        %847 = vmatpush1.bf16.msra.mxu0 0
        %848 = vmatprep.subr.bf16.mxu0 0
        %849 = vmatpush1.bf16.msra.mxu0 0
        %850 = vmatprep.subr.bf16.mxu0 0
        %851 = vmatpush1.bf16.msra.mxu0 0
        %852 = vmatprep.subr.bf16.mxu0 0
        %853 = vmatpush1.bf16.msra.mxu0 0
        %854 = vmatprep.subr.bf16.mxu0 0
        %855 = vmatpush1.bf16.msra.mxu0 0
        %856 = vmatprep.subr.bf16.mxu0 0
        %857 = vmatpush1.bf16.msra.mxu0 0
        %858 = vmatprep.subr.bf16.mxu0 0
        %859 = vmatpush1.bf16.msra.mxu0 0
        %860 = vmatprep.subr.bf16.mxu0 0
        %861 = vmatpush1.bf16.msra.mxu0 0
        %862 = vmatprep.mubr.bf16.mxu0 0
        %863 = vmatmul.mubr.bf16.gmra.mrb[0].mxu0 %v828
        %v864 = vpop.f32.mrb[0].mxu0
        %v865 = vadd.f32 %v813, %v864
        %v866 = vpop.f32.mrb[0].mxu0
        %v867 = vpop.f32.mrb[0].mxu0
        %v868 = vadd.f32 %v813, %v867
        %v869 = vpop.f32.mrb[0].mxu0
        %870 = vdwg.mxu0
        %v871 = vld [vmem:[#allocation8] sm:$0xf]
        %v872 = vld [vmem:[#allocation8 + $0x4] sm:$0xf]
        %v873 = vld [vmem:[#allocation8 + $0x8] sm:$0xf]
        %v874 = vld [vmem:[#allocation8 + $0xc] sm:$0xf]
        %v875 = vld [vmem:[#allocation13] sm:$0x1]
        %v877 = vlaneseq
        %v878 = vshrl.u32 %v877, 7
        %v879 = vsub.s32 0, %v878
        %v880 = vrot.slane %v875, %v879
        %v886 = vunpack.c.l.b16 %v871
        %v887 = vunpack.c.l.b16 %v872
        %v888 = vunpack.c.l.b16 %v873
        %v889 = vunpack.c.l.b16 %v874
        %v890 = vpack.c.b16 %v887, %v886
        %v891 = vpack.c.b16 %v889, %v888
        %894 = vmatprep.subr.bf16.mxu0 0
        %895 = vmatpush1.bf16.msra.mxu0 %v890
        %896 = vmatprep.subr.bf16.mxu0 0
        %897 = vmatpush1.bf16.msra.mxu0 %v891
        %898 = vmatprep.subr.bf16.mxu0 0
        %899 = vmatpush1.bf16.msra.mxu0 0
        %900 = vmatprep.subr.bf16.mxu0 0
        %901 = vmatpush1.bf16.msra.mxu0 0
        %902 = vmatprep.subr.bf16.mxu0 0
        %903 = vmatpush1.bf16.msra.mxu0 0
        %904 = vmatprep.subr.bf16.mxu0 0
        %905 = vmatpush1.bf16.msra.mxu0 0
        %906 = vmatprep.subr.bf16.mxu0 0
        %907 = vmatpush1.bf16.msra.mxu0 0
        %908 = vmatprep.subr.bf16.mxu0 0
        %909 = vmatpush1.bf16.msra.mxu0 0
        %910 = vmatprep.subr.bf16.mxu0 0
        %911 = vmatpush1.bf16.msra.mxu0 0
        %912 = vmatprep.subr.bf16.mxu0 0
        %913 = vmatpush1.bf16.msra.mxu0 0
        %914 = vmatprep.subr.bf16.mxu0 0
        %915 = vmatpush1.bf16.msra.mxu0 0
        %916 = vmatprep.subr.bf16.mxu0 0
        %917 = vmatpush1.bf16.msra.mxu0 0
        %918 = vmatprep.subr.bf16.mxu0 0
        %919 = vmatpush1.bf16.msra.mxu0 0
        %920 = vmatprep.subr.bf16.mxu0 0
        %921 = vmatpush1.bf16.msra.mxu0 0
        %922 = vmatprep.subr.bf16.mxu0 0
        %923 = vmatpush1.bf16.msra.mxu0 0
        %924 = vmatprep.subr.bf16.mxu0 0
        %925 = vmatpush1.bf16.msra.mxu0 0
        %926 = vmatprep.mubr.bf16.mxu0 0
        %927 = vmatmul.mubr.bf16.gmra.mrb[0].mxu0 %v828
        %v928 = vpop.f32.mrb[0].mxu0
        %v929 = vadd.f32 %v880, %v928
        %v930 = vpop.f32.mrb[0].mxu0
        %v931 = vpop.f32.mrb[0].mxu0
        %v932 = vadd.f32 %v880, %v931
        %v933 = vpop.f32.mrb[0].mxu0
        %934 = vdwg.mxu0
        %v935 = vld [vmem:[#allocation10] sm:$0xf]
        %v936 = vld [vmem:[#allocation10 + $0x4] sm:$0xf]
        %v937 = vld [vmem:[#allocation10 + $0x8] sm:$0xf]
        %v938 = vld [vmem:[#allocation10 + $0xc] sm:$0xf]
        %v939 = vld [vmem:[#allocation14] sm:$0x1]
        %v941 = vlaneseq
        %v942 = vshrl.u32 %v941, 7
        %v943 = vsub.s32 0, %v942
        %v944 = vrot.slane %v939, %v943
        %v950 = vunpack.c.l.b16 %v935
        %v951 = vunpack.c.l.b16 %v936
        %v952 = vunpack.c.l.b16 %v937
        %v953 = vunpack.c.l.b16 %v938
        %v954 = vpack.c.b16 %v951, %v950
        %v955 = vpack.c.b16 %v953, %v952
        %958 = vmatprep.subr.bf16.mxu0 0
        %959 = vmatpush1.bf16.msra.mxu0 %v954
        %960 = vmatprep.subr.bf16.mxu0 0
        %961 = vmatpush1.bf16.msra.mxu0 %v955
        %962 = vmatprep.subr.bf16.mxu0 0
        %963 = vmatpush1.bf16.msra.mxu0 0
        %964 = vmatprep.subr.bf16.mxu0 0
        %965 = vmatpush1.bf16.msra.mxu0 0
        %966 = vmatprep.subr.bf16.mxu0 0
        %967 = vmatpush1.bf16.msra.mxu0 0
        %968 = vmatprep.subr.bf16.mxu0 0
        %969 = vmatpush1.bf16.msra.mxu0 0
        %970 = vmatprep.subr.bf16.mxu0 0
        %971 = vmatpush1.bf16.msra.mxu0 0
        %972 = vmatprep.subr.bf16.mxu0 0
        %973 = vmatpush1.bf16.msra.mxu0 0
        %974 = vmatprep.subr.bf16.mxu0 0
        %975 = vmatpush1.bf16.msra.mxu0 0
        %976 = vmatprep.subr.bf16.mxu0 0
        %977 = vmatpush1.bf16.msra.mxu0 0
        %978 = vmatprep.subr.bf16.mxu0 0
        %979 = vmatpush1.bf16.msra.mxu0 0
        %980 = vmatprep.subr.bf16.mxu0 0
        %981 = vmatpush1.bf16.msra.mxu0 0
        %982 = vmatprep.subr.bf16.mxu0 0
        %983 = vmatpush1.bf16.msra.mxu0 0
        %984 = vmatprep.subr.bf16.mxu0 0
        %985 = vmatpush1.bf16.msra.mxu0 0
        %986 = vmatprep.subr.bf16.mxu0 0
        %987 = vmatpush1.bf16.msra.mxu0 0
        %988 = vmatprep.subr.bf16.mxu0 0
        %989 = vmatpush1.bf16.msra.mxu0 0
        %990 = vmatprep.mubr.bf16.mxu0 0
        %991 = vmatmul.mubr.bf16.gmra.mrb[0].mxu0 %v828
        %v992 = vpop.f32.mrb[0].mxu0
        %v993 = vadd.f32 %v944, %v992
        %v994 = vpop.f32.mrb[0].mxu0
        %v995 = vpop.f32.mrb[0].mxu0
        %v996 = vadd.f32 %v944, %v995
        %v997 = vpop.f32.mrb[0].mxu0
        %998 = vdwg.mxu0
        %v999 = vmul.f32 %v865, 0.35355338
        %v1000 = vmul.f32 %v868, 0.35355338
        %v1001 = vld [vmem:[%s2] sm:$0xff]
        %v1002 = vld [vmem:[%s2 + $0x8] sm:$0xff]
        %v1003 = vld [vmem:[%s654] sm:$0x1]
        %v1005 = vlaneseq
        %v1006 = vshrl.u32 %v1005, 7
        %v1007 = vsub.s32 0, %v1006
        %v1008 = vrot.slane %v1003, %v1007
        %v1010 = vadd.f32 %v1001, %v1008
        %v1011 = vadd.f32 %v1002, %v1008
        %vm1012 = vcmask 64512
        %v1014 = vsel %vm1012, %v999, 0
        %v1017 = vsel %vm1012, %v1000, 0
        %v1020 = vsel %vm1012, %v929, 0
        %v1023 = vsel %vm1012, %v932, 0
        %1025 = vmatprep.subr.mxu0 0.0
        %1026 = vmatpush1.xpose.msra.mxu0 %v1020
        %1027 = vmatprep.subr.mxu0 0.0
        %1028 = vmatpush1.xpose.msra.mxu0 %v1023
        %1029 = vmatprep.subr.mxu0 0.0
        %1030 = vmatpush1.xpose.msra.mxu0 0.0
        %1031 = vmatprep.subr.mxu0 0.0
        %1032 = vmatpush1.xpose.msra.mxu0 0.0
        %1033 = vmatprep.subr.mxu0 0.0
        %1034 = vmatpush1.xpose.msra.mxu0 0.0
        %1035 = vmatprep.subr.mxu0 0.0
        %1036 = vmatpush1.xpose.msra.mxu0 0.0
        %1037 = vmatprep.subr.mxu0 0.0
        %1038 = vmatpush1.xpose.msra.mxu0 0.0
        %1039 = vmatprep.subr.mxu0 0.0
        %1040 = vmatpush1.xpose.msra.mxu0 0.0
        %1041 = vmatprep.subr.mxu0 0.0
        %1042 = vmatpush1.xpose.msra.mxu0 0.0
        %1043 = vmatprep.subr.mxu0 0.0
        %1044 = vmatpush1.xpose.msra.mxu0 0.0
        %1045 = vmatprep.subr.mxu0 0.0
        %1046 = vmatpush1.xpose.msra.mxu0 0.0
        %1047 = vmatprep.subr.mxu0 0.0
        %1048 = vmatpush1.xpose.msra.mxu0 0.0
        %1049 = vmatprep.subr.mxu0 0.0
        %1050 = vmatpush1.xpose.msra.mxu0 0.0
        %1051 = vmatprep.subr.mxu0 0.0
        %1052 = vmatpush1.xpose.msra.mxu0 0.0
        %1053 = vmatprep.subr.mxu0 0.0
        %1054 = vmatpush1.xpose.msra.mxu0 0.0
        %1055 = vmatprep.subr.mxu0 0.0
        %1056 = vmatpush1.xpose.msra.mxu0 0.0
        %1057 = vmatprep.subr.mxu0 0.0
        %1058 = vmatpush1.xpose.msra.mxu0 0.0
        %1059 = vmatprep.subr.mxu0 0.0
        %1060 = vmatpush1.xpose.msra.mxu0 0.0
        %1061 = vmatprep.subr.mxu0 0.0
        %1062 = vmatpush1.xpose.msra.mxu0 0.0
        %1063 = vmatprep.subr.mxu0 0.0
        %1064 = vmatpush1.xpose.msra.mxu0 0.0
        %1065 = vmatprep.subr.mxu0 0.0
        %1066 = vmatpush1.xpose.msra.mxu0 0.0
        %1067 = vmatprep.subr.mxu0 0.0
        %1068 = vmatpush1.xpose.msra.mxu0 0.0
        %1069 = vmatprep.subr.mxu0 0.0
        %1070 = vmatpush1.xpose.msra.mxu0 0.0
        %1071 = vmatprep.subr.mxu0 0.0
        %1072 = vmatpush1.xpose.msra.mxu0 0.0
        %1073 = vmatprep.subr.mxu0 0.0
        %1074 = vmatpush1.xpose.msra.mxu0 0.0
        %1075 = vmatprep.subr.mxu0 0.0
        %1076 = vmatpush1.xpose.msra.mxu0 0.0
        %1077 = vmatprep.subr.mxu0 0.0
        %1078 = vmatpush1.xpose.msra.mxu0 0.0
        %1079 = vmatprep.subr.mxu0 0.0
        %1080 = vmatpush1.xpose.msra.mxu0 0.0
        %1081 = vmatprep.subr.mxu0 0.0
        %1082 = vmatpush1.xpose.msra.mxu0 0.0
        %1083 = vmatprep.subr.mxu0 0.0
        %1084 = vmatpush1.xpose.msra.mxu0 0.0
        %1085 = vmatprep.subr.mxu0 0.0
        %1086 = vmatpush1.xpose.msra.mxu0 0.0
        %1087 = vmatprep.subr.mxu0 0.0
        %1088 = vmatpush1.xpose.msra.mxu0 0.0
        %1089 = vmatprep.mubr.f32.mxu0 0.0
        %1090 = vmatmul.mubr.f32.gmra.mrb[0].mxu0 %v1014
        %v1091 = vpop.f32.mrb[0].mxu0
        %v1092 = vadd.f32 %v1010, %v1091
        %v1093 = vpop.f32.mrb[0].mxu0
        %1094 = vmatprep.mubr.f32.mxu0 0.0
        %1095 = vmatmul.mubr.f32.gmra.mrb[0].mxu0 %v1017
        %v1096 = vpop.f32.mrb[0].mxu0
        %v1097 = vadd.f32 %v1011, %v1096
        %v1098 = vpop.f32.mrb[0].mxu0
        %1099 = vdwg.mxu0
        %vm1100 = vcmask 130048
        %v1101 = vsel %vm1100, %v1092, -inf
        %1102 = vmax.xlane.f32.xlu0 %v1101
        %v1103 = vpop.xlane.xlu0 %1102
        %v1104 = vsel %vm1100, %v1097, -inf
        %1105 = vmax.xlane.f32.xlu0 %v1104
        %v1106 = vpop.xlane.xlu0 %1105
        %v1107 = vsub.f32 %v1092, %v1103
        %v1108 = vsub.f32 %v1097, %v1106
        %v1109 = vmul.f32 %v1107, 1.442695
        %v1110 = vpow.pop %v1109
        %v1111 = vmul.f32 %v1108, 1.442695
        %v1112 = vpow.pop %v1111
        %v1113 = vsel %vm1100, %v1110, 0.0
        %1114 = vadd.xlane.f32.xlu0 %v1113
        %v1115 = vpop.xlane.xlu0 %1114
        %v1116 = vsel %vm1100, %v1112, 0.0
        %1117 = vadd.xlane.f32.xlu0 %v1116
        %v1118 = vpop.xlane.xlu0 %1117
        %v1119 = vrcp.pop %v1115
        %v1120 = vrcp.pop %v1118
        %v1121 = vmul.f32 %v1110, %v1119
        %v1122 = vmul.f32 %v1112, %v1120
        %v1124 = vsel %vm1100, %v1121, 0
        %v1127 = vsel %vm1100, %v1122, 0
        %1129 = vmatprep.subr.mxu0 0.0
        %1130 = vmatpush1.msra.mxu0 %v993
        %1131 = vmatprep.subr.mxu0 0.0
        %1132 = vmatpush1.msra.mxu0 %v996
        %1133 = vmatprep.subr.mxu0 0.0
        %1134 = vmatpush1.msra.mxu0 0.0
        %1135 = vmatprep.subr.mxu0 0.0
        %1136 = vmatpush1.msra.mxu0 0.0
        %1137 = vmatprep.subr.mxu0 0.0
        %1138 = vmatpush1.msra.mxu0 0.0
        %1139 = vmatprep.subr.mxu0 0.0
        %1140 = vmatpush1.msra.mxu0 0.0
        %1141 = vmatprep.subr.mxu0 0.0
        %1142 = vmatpush1.msra.mxu0 0.0
        %1143 = vmatprep.subr.mxu0 0.0
        %1144 = vmatpush1.msra.mxu0 0.0
        %1145 = vmatprep.subr.mxu0 0.0
        %1146 = vmatpush1.msra.mxu0 0.0
        %1147 = vmatprep.subr.mxu0 0.0
        %1148 = vmatpush1.msra.mxu0 0.0
        %1149 = vmatprep.subr.mxu0 0.0
        %1150 = vmatpush1.msra.mxu0 0.0
        %1151 = vmatprep.subr.mxu0 0.0
        %1152 = vmatpush1.msra.mxu0 0.0
        %1153 = vmatprep.subr.mxu0 0.0
        %1154 = vmatpush1.msra.mxu0 0.0
        %1155 = vmatprep.subr.mxu0 0.0
        %1156 = vmatpush1.msra.mxu0 0.0
        %1157 = vmatprep.subr.mxu0 0.0
        %1158 = vmatpush1.msra.mxu0 0.0
        %1159 = vmatprep.subr.mxu0 0.0
        %1160 = vmatpush1.msra.mxu0 0.0
        %1161 = vmatprep.subr.mxu0 0.0
        %1162 = vmatpush1.msra.mxu0 0.0
        %1163 = vmatprep.subr.mxu0 0.0
        %1164 = vmatpush1.msra.mxu0 0.0
        %1165 = vmatprep.subr.mxu0 0.0
        %1166 = vmatpush1.msra.mxu0 0.0
        %1167 = vmatprep.subr.mxu0 0.0
        %1168 = vmatpush1.msra.mxu0 0.0
        %1169 = vmatprep.subr.mxu0 0.0
        %1170 = vmatpush1.msra.mxu0 0.0
        %1171 = vmatprep.subr.mxu0 0.0
        %1172 = vmatpush1.msra.mxu0 0.0
        %1173 = vmatprep.subr.mxu0 0.0
        %1174 = vmatpush1.msra.mxu0 0.0
        %1175 = vmatprep.subr.mxu0 0.0
        %1176 = vmatpush1.msra.mxu0 0.0
        %1177 = vmatprep.subr.mxu0 0.0
        %1178 = vmatpush1.msra.mxu0 0.0
        %1179 = vmatprep.subr.mxu0 0.0
        %1180 = vmatpush1.msra.mxu0 0.0
        %1181 = vmatprep.subr.mxu0 0.0
        %1182 = vmatpush1.msra.mxu0 0.0
        %1183 = vmatprep.subr.mxu0 0.0
        %1184 = vmatpush1.msra.mxu0 0.0
        %1185 = vmatprep.subr.mxu0 0.0
        %1186 = vmatpush1.msra.mxu0 0.0
        %1187 = vmatprep.subr.mxu0 0.0
        %1188 = vmatpush1.msra.mxu0 0.0
        %1189 = vmatprep.subr.mxu0 0.0
        %1190 = vmatpush1.msra.mxu0 0.0
        %1191 = vmatprep.subr.mxu0 0.0
        %1192 = vmatpush1.msra.mxu0 0.0
        %1193 = vmatprep.mubr.f32.mxu0 0.0
        %1194 = vmatmul.mubr.f32.gmra.mrb[0].mxu0 %v1124
        %v1195 = vpop.f32.mrb[0].mxu0
        %v1196 = vadd.f32 0.0, %v1195
        %v1197 = vpop.f32.mrb[0].mxu0
        %1198 = vmatprep.mubr.f32.mxu0 0.0
        %1199 = vmatmul.mubr.f32.gmra.mrb[0].mxu0 %v1127
        %v1200 = vpop.f32.mrb[0].mxu0
        %v1201 = vadd.f32 0.0, %v1200
        %v1202 = vpop.f32.mrb[0].mxu0
        %1203 = vdwg.mxu0
        %1204 = vrot.lane.b32.xlu0 %v999, 120
        %v1205 = vpop.permute.xlu0 %1204
        %1206 = vrot.lane.b32.xlu0 %v1000, 120
        %v1207 = vpop.permute.xlu0 %1206
        %1208 = vrot.lane.b32.xlu0 %v929, 120
        %v1209 = vpop.permute.xlu0 %1208
        %1210 = vrot.lane.b32.xlu0 %v932, 120
        %v1211 = vpop.permute.xlu0 %1210
        %v1212 = vsel %vm1012, %v1205, 0
        %v1214 = vsel %vm1012, %v1207, 0
        %v1216 = vsel %vm1012, %v1209, 0
        %v1218 = vsel %vm1012, %v1211, 0
        %1220 = vmatprep.subr.mxu0 0.0
        %1221 = vmatpush1.xpose.msra.mxu0 %v1216
        %1222 = vmatprep.subr.mxu0 0.0
        %1223 = vmatpush1.xpose.msra.mxu0 %v1218
        %1224 = vmatprep.subr.mxu0 0.0
        %1225 = vmatpush1.xpose.msra.mxu0 0.0
        %1226 = vmatprep.subr.mxu0 0.0
        %1227 = vmatpush1.xpose.msra.mxu0 0.0
        %1228 = vmatprep.subr.mxu0 0.0
        %1229 = vmatpush1.xpose.msra.mxu0 0.0
        %1230 = vmatprep.subr.mxu0 0.0
        %1231 = vmatpush1.xpose.msra.mxu0 0.0
        %1232 = vmatprep.subr.mxu0 0.0
        %1233 = vmatpush1.xpose.msra.mxu0 0.0
        %1234 = vmatprep.subr.mxu0 0.0
        %1235 = vmatpush1.xpose.msra.mxu0 0.0
        %1236 = vmatprep.subr.mxu0 0.0
        %1237 = vmatpush1.xpose.msra.mxu0 0.0
        %1238 = vmatprep.subr.mxu0 0.0
        %1239 = vmatpush1.xpose.msra.mxu0 0.0
        %1240 = vmatprep.subr.mxu0 0.0
        %1241 = vmatpush1.xpose.msra.mxu0 0.0
        %1242 = vmatprep.subr.mxu0 0.0
        %1243 = vmatpush1.xpose.msra.mxu0 0.0
        %1244 = vmatprep.subr.mxu0 0.0
        %1245 = vmatpush1.xpose.msra.mxu0 0.0
        %1246 = vmatprep.subr.mxu0 0.0
        %1247 = vmatpush1.xpose.msra.mxu0 0.0
        %1248 = vmatprep.subr.mxu0 0.0
        %1249 = vmatpush1.xpose.msra.mxu0 0.0
        %1250 = vmatprep.subr.mxu0 0.0
        %1251 = vmatpush1.xpose.msra.mxu0 0.0
        %1252 = vmatprep.subr.mxu0 0.0
        %1253 = vmatpush1.xpose.msra.mxu0 0.0
        %1254 = vmatprep.subr.mxu0 0.0
        %1255 = vmatpush1.xpose.msra.mxu0 0.0
        %1256 = vmatprep.subr.mxu0 0.0
        %1257 = vmatpush1.xpose.msra.mxu0 0.0
        %1258 = vmatprep.subr.mxu0 0.0
        %1259 = vmatpush1.xpose.msra.mxu0 0.0
        %1260 = vmatprep.subr.mxu0 0.0
        %1261 = vmatpush1.xpose.msra.mxu0 0.0
        %1262 = vmatprep.subr.mxu0 0.0
        %1263 = vmatpush1.xpose.msra.mxu0 0.0
        %1264 = vmatprep.subr.mxu0 0.0
        %1265 = vmatpush1.xpose.msra.mxu0 0.0
        %1266 = vmatprep.subr.mxu0 0.0
        %1267 = vmatpush1.xpose.msra.mxu0 0.0
        %1268 = vmatprep.subr.mxu0 0.0
        %1269 = vmatpush1.xpose.msra.mxu0 0.0
        %1270 = vmatprep.subr.mxu0 0.0
        %1271 = vmatpush1.xpose.msra.mxu0 0.0
        %1272 = vmatprep.subr.mxu0 0.0
        %1273 = vmatpush1.xpose.msra.mxu0 0.0
        %1274 = vmatprep.subr.mxu0 0.0
        %1275 = vmatpush1.xpose.msra.mxu0 0.0
        %1276 = vmatprep.subr.mxu0 0.0
        %1277 = vmatpush1.xpose.msra.mxu0 0.0
        %1278 = vmatprep.subr.mxu0 0.0
        %1279 = vmatpush1.xpose.msra.mxu0 0.0
        %1280 = vmatprep.subr.mxu0 0.0
        %1281 = vmatpush1.xpose.msra.mxu0 0.0
        %1282 = vmatprep.subr.mxu0 0.0
        %1283 = vmatpush1.xpose.msra.mxu0 0.0
        %1284 = vmatprep.mubr.f32.mxu0 0.0
        %1285 = vmatmul.mubr.f32.gmra.mrb[0].mxu0 %v1212
        %v1286 = vpop.f32.mrb[0].mxu0
        %v1287 = vadd.f32 %v1010, %v1286
        %v1288 = vpop.f32.mrb[0].mxu0
        %1289 = vmatprep.mubr.f32.mxu0 0.0
        %1290 = vmatmul.mubr.f32.gmra.mrb[0].mxu0 %v1214
        %v1291 = vpop.f32.mrb[0].mxu0
        %v1292 = vadd.f32 %v1011, %v1291
        %v1293 = vpop.f32.mrb[0].mxu0
        %1294 = vdwg.mxu0
        %v1295 = vsel %vm1100, %v1287, -inf
        %1296 = vmax.xlane.f32.xlu0 %v1295
        %v1297 = vpop.xlane.xlu0 %1296
        %v1298 = vsel %vm1100, %v1292, -inf
        %1299 = vmax.xlane.f32.xlu0 %v1298
        %v1300 = vpop.xlane.xlu0 %1299
        %v1301 = vsub.f32 %v1287, %v1297
        %v1302 = vsub.f32 %v1292, %v1300
        %v1303 = vmul.f32 %v1301, 1.442695
        %v1304 = vpow.pop %v1303
        %v1305 = vmul.f32 %v1302, 1.442695
        %v1306 = vpow.pop %v1305
        %v1307 = vsel %vm1100, %v1304, 0.0
        %1308 = vadd.xlane.f32.xlu0 %v1307
        %v1309 = vpop.xlane.xlu0 %1308
        %v1310 = vsel %vm1100, %v1306, 0.0
        %1311 = vadd.xlane.f32.xlu0 %v1310
        %v1312 = vpop.xlane.xlu0 %1311
        %v1313 = vrcp.pop %v1309
        %v1314 = vrcp.pop %v1312
        %v1315 = vmul.f32 %v1304, %v1313
        %v1316 = vmul.f32 %v1306, %v1314
        %1319 = vrot.lane.b32.xlu0 %v993, 120
        %v1320 = vpop.permute.xlu0 %1319
        %1321 = vrot.lane.b32.xlu0 %v996, 120
        %v1322 = vpop.permute.xlu0 %1321
        %v1326 = vsel %vm1100, %v1315, 0
        %v1329 = vsel %vm1100, %v1316, 0
        %1331 = vmatprep.subr.mxu0 0.0
        %1332 = vmatpush1.msra.mxu0 %v1320
        %1333 = vmatprep.subr.mxu0 0.0
        %1334 = vmatpush1.msra.mxu0 %v1322
        %1335 = vmatprep.subr.mxu0 0.0
        %1336 = vmatpush1.msra.mxu0 0.0
        %1337 = vmatprep.subr.mxu0 0.0
        %1338 = vmatpush1.msra.mxu0 0.0
        %1339 = vmatprep.subr.mxu0 0.0
        %1340 = vmatpush1.msra.mxu0 0.0
        %1341 = vmatprep.subr.mxu0 0.0
        %1342 = vmatpush1.msra.mxu0 0.0
        %1343 = vmatprep.subr.mxu0 0.0
        %1344 = vmatpush1.msra.mxu0 0.0
        %1345 = vmatprep.subr.mxu0 0.0
        %1346 = vmatpush1.msra.mxu0 0.0
        %1347 = vmatprep.subr.mxu0 0.0
        %1348 = vmatpush1.msra.mxu0 0.0
        %1349 = vmatprep.subr.mxu0 0.0
        %1350 = vmatpush1.msra.mxu0 0.0
        %1351 = vmatprep.subr.mxu0 0.0
        %1352 = vmatpush1.msra.mxu0 0.0
        %1353 = vmatprep.subr.mxu0 0.0
        %1354 = vmatpush1.msra.mxu0 0.0
        %1355 = vmatprep.subr.mxu0 0.0
        %1356 = vmatpush1.msra.mxu0 0.0
        %1357 = vmatprep.subr.mxu0 0.0
        %1358 = vmatpush1.msra.mxu0 0.0
        %1359 = vmatprep.subr.mxu0 0.0
        %1360 = vmatpush1.msra.mxu0 0.0
        %1361 = vmatprep.subr.mxu0 0.0
        %1362 = vmatpush1.msra.mxu0 0.0
        %1363 = vmatprep.subr.mxu0 0.0
        %1364 = vmatpush1.msra.mxu0 0.0
        %1365 = vmatprep.subr.mxu0 0.0
        %1366 = vmatpush1.msra.mxu0 0.0
        %1367 = vmatprep.subr.mxu0 0.0
        %1368 = vmatpush1.msra.mxu0 0.0
        %1369 = vmatprep.subr.mxu0 0.0
        %1370 = vmatpush1.msra.mxu0 0.0
        %1371 = vmatprep.subr.mxu0 0.0
        %1372 = vmatpush1.msra.mxu0 0.0
        %1373 = vmatprep.subr.mxu0 0.0
        %1374 = vmatpush1.msra.mxu0 0.0
        %1375 = vmatprep.subr.mxu0 0.0
        %1376 = vmatpush1.msra.mxu0 0.0
        %1377 = vmatprep.subr.mxu0 0.0
        %1378 = vmatpush1.msra.mxu0 0.0
        %1379 = vmatprep.subr.mxu0 0.0
        %1380 = vmatpush1.msra.mxu0 0.0
        %1381 = vmatprep.subr.mxu0 0.0
        %1382 = vmatpush1.msra.mxu0 0.0
        %1383 = vmatprep.subr.mxu0 0.0
        %1384 = vmatpush1.msra.mxu0 0.0
        %1385 = vmatprep.subr.mxu0 0.0
        %1386 = vmatpush1.msra.mxu0 0.0
        %1387 = vmatprep.subr.mxu0 0.0
        %1388 = vmatpush1.msra.mxu0 0.0
        %1389 = vmatprep.subr.mxu0 0.0
        %1390 = vmatpush1.msra.mxu0 0.0
        %1391 = vmatprep.subr.mxu0 0.0
        %1392 = vmatpush1.msra.mxu0 0.0
        %1393 = vmatprep.subr.mxu0 0.0
        %1394 = vmatpush1.msra.mxu0 0.0
        %1395 = vmatprep.mubr.f32.mxu0 0.0
        %1396 = vmatmul.mubr.f32.gmra.mrb[0].mxu0 %v1326
        %v1397 = vpop.f32.mrb[0].mxu0
        %v1398 = vadd.f32 0.0, %v1397
        %v1399 = vpop.f32.mrb[0].mxu0
        %1400 = vmatprep.mubr.f32.mxu0 0.0
        %1401 = vmatmul.mubr.f32.gmra.mrb[0].mxu0 %v1329
        %v1402 = vpop.f32.mrb[0].mxu0
        %v1403 = vadd.f32 0.0, %v1402
        %v1404 = vpop.f32.mrb[0].mxu0
        %1405 = vdwg.mxu0
        %1406 = vrot.lane.b32.xlu0 %v999, 112
        %v1407 = vpop.permute.xlu0 %1406
        %1408 = vrot.lane.b32.xlu0 %v1000, 112
        %v1409 = vpop.permute.xlu0 %1408
        %1410 = vrot.lane.b32.xlu0 %v929, 112
        %v1411 = vpop.permute.xlu0 %1410
        %1412 = vrot.lane.b32.xlu0 %v932, 112
        %v1413 = vpop.permute.xlu0 %1412
        %v1414 = vsel %vm1012, %v1407, 0
        %v1416 = vsel %vm1012, %v1409, 0
        %v1418 = vsel %vm1012, %v1411, 0
        %v1420 = vsel %vm1012, %v1413, 0
        %1422 = vmatprep.subr.mxu0 0.0
        %1423 = vmatpush1.xpose.msra.mxu0 %v1418
        %1424 = vmatprep.subr.mxu0 0.0
        %1425 = vmatpush1.xpose.msra.mxu0 %v1420
        %1426 = vmatprep.subr.mxu0 0.0
        %1427 = vmatpush1.xpose.msra.mxu0 0.0
        %1428 = vmatprep.subr.mxu0 0.0
        %1429 = vmatpush1.xpose.msra.mxu0 0.0
        %1430 = vmatprep.subr.mxu0 0.0
        %1431 = vmatpush1.xpose.msra.mxu0 0.0
        %1432 = vmatprep.subr.mxu0 0.0
        %1433 = vmatpush1.xpose.msra.mxu0 0.0
        %1434 = vmatprep.subr.mxu0 0.0
        %1435 = vmatpush1.xpose.msra.mxu0 0.0
        %1436 = vmatprep.subr.mxu0 0.0
        %1437 = vmatpush1.xpose.msra.mxu0 0.0
        %1438 = vmatprep.subr.mxu0 0.0
        %1439 = vmatpush1.xpose.msra.mxu0 0.0
        %1440 = vmatprep.subr.mxu0 0.0
        %1441 = vmatpush1.xpose.msra.mxu0 0.0
        %1442 = vmatprep.subr.mxu0 0.0
        %1443 = vmatpush1.xpose.msra.mxu0 0.0
        %1444 = vmatprep.subr.mxu0 0.0
        %1445 = vmatpush1.xpose.msra.mxu0 0.0
        %1446 = vmatprep.subr.mxu0 0.0
        %1447 = vmatpush1.xpose.msra.mxu0 0.0
        %1448 = vmatprep.subr.mxu0 0.0
        %1449 = vmatpush1.xpose.msra.mxu0 0.0
        %1450 = vmatprep.subr.mxu0 0.0
        %1451 = vmatpush1.xpose.msra.mxu0 0.0
        %1452 = vmatprep.subr.mxu0 0.0
        %1453 = vmatpush1.xpose.msra.mxu0 0.0
        %1454 = vmatprep.subr.mxu0 0.0
        %1455 = vmatpush1.xpose.msra.mxu0 0.0
        %1456 = vmatprep.subr.mxu0 0.0
        %1457 = vmatpush1.xpose.msra.mxu0 0.0
        %1458 = vmatprep.subr.mxu0 0.0
        %1459 = vmatpush1.xpose.msra.mxu0 0.0
        %1460 = vmatprep.subr.mxu0 0.0
        %1461 = vmatpush1.xpose.msra.mxu0 0.0
        %1462 = vmatprep.subr.mxu0 0.0
        %1463 = vmatpush1.xpose.msra.mxu0 0.0
        %1464 = vmatprep.subr.mxu0 0.0
        %1465 = vmatpush1.xpose.msra.mxu0 0.0
        %1466 = vmatprep.subr.mxu0 0.0
        %1467 = vmatpush1.xpose.msra.mxu0 0.0
        %1468 = vmatprep.subr.mxu0 0.0
        %1469 = vmatpush1.xpose.msra.mxu0 0.0
        %1470 = vmatprep.subr.mxu0 0.0
        %1471 = vmatpush1.xpose.msra.mxu0 0.0
        %1472 = vmatprep.subr.mxu0 0.0
        %1473 = vmatpush1.xpose.msra.mxu0 0.0
        %1474 = vmatprep.subr.mxu0 0.0
        %1475 = vmatpush1.xpose.msra.mxu0 0.0
        %1476 = vmatprep.subr.mxu0 0.0
        %1477 = vmatpush1.xpose.msra.mxu0 0.0
        %1478 = vmatprep.subr.mxu0 0.0
        %1479 = vmatpush1.xpose.msra.mxu0 0.0
        %1480 = vmatprep.subr.mxu0 0.0
        %1481 = vmatpush1.xpose.msra.mxu0 0.0
        %1482 = vmatprep.subr.mxu0 0.0
        %1483 = vmatpush1.xpose.msra.mxu0 0.0
        %1484 = vmatprep.subr.mxu0 0.0
        %1485 = vmatpush1.xpose.msra.mxu0 0.0
        %1486 = vmatprep.mubr.f32.mxu0 0.0
        %1487 = vmatmul.mubr.f32.gmra.mrb[0].mxu0 %v1414
        %v1488 = vpop.f32.mrb[0].mxu0
        %v1489 = vadd.f32 %v1010, %v1488
        %v1490 = vpop.f32.mrb[0].mxu0
        %1491 = vmatprep.mubr.f32.mxu0 0.0
        %1492 = vmatmul.mubr.f32.gmra.mrb[0].mxu0 %v1416
        %v1493 = vpop.f32.mrb[0].mxu0
        %v1494 = vadd.f32 %v1011, %v1493
        %v1495 = vpop.f32.mrb[0].mxu0
        %1496 = vdwg.mxu0
        %v1497 = vsel %vm1100, %v1489, -inf
        %1498 = vmax.xlane.f32.xlu0 %v1497
        %v1499 = vpop.xlane.xlu0 %1498
        %v1500 = vsel %vm1100, %v1494, -inf
        %1501 = vmax.xlane.f32.xlu0 %v1500
        %v1502 = vpop.xlane.xlu0 %1501
        %v1503 = vsub.f32 %v1489, %v1499
        %v1504 = vsub.f32 %v1494, %v1502
        %v1505 = vmul.f32 %v1503, 1.442695
        %v1506 = vpow.pop %v1505
        %v1507 = vmul.f32 %v1504, 1.442695
        %v1508 = vpow.pop %v1507
        %v1509 = vsel %vm1100, %v1506, 0.0
        %1510 = vadd.xlane.f32.xlu0 %v1509
        %v1511 = vpop.xlane.xlu0 %1510
        %v1512 = vsel %vm1100, %v1508, 0.0
        %1513 = vadd.xlane.f32.xlu0 %v1512
        %v1514 = vpop.xlane.xlu0 %1513
        %v1515 = vrcp.pop %v1511
        %v1516 = vrcp.pop %v1514
        %v1517 = vmul.f32 %v1506, %v1515
        %v1518 = vmul.f32 %v1508, %v1516
        %1519 = vrot.lane.b32.xlu0 %v993, 112
        %v1520 = vpop.permute.xlu0 %1519
        %1521 = vrot.lane.b32.xlu0 %v996, 112
        %v1522 = vpop.permute.xlu0 %1521
        %v1526 = vsel %vm1100, %v1517, 0
        %v1529 = vsel %vm1100, %v1518, 0
        %1531 = vmatprep.subr.mxu0 0.0
        %1532 = vmatpush1.msra.mxu0 %v1520
        %1533 = vmatprep.subr.mxu0 0.0
        %1534 = vmatpush1.msra.mxu0 %v1522
        %1535 = vmatprep.subr.mxu0 0.0
        %1536 = vmatpush1.msra.mxu0 0.0
        %1537 = vmatprep.subr.mxu0 0.0
        %1538 = vmatpush1.msra.mxu0 0.0
        %1539 = vmatprep.subr.mxu0 0.0
        %1540 = vmatpush1.msra.mxu0 0.0
        %1541 = vmatprep.subr.mxu0 0.0
        %1542 = vmatpush1.msra.mxu0 0.0
        %1543 = vmatprep.subr.mxu0 0.0
        %1544 = vmatpush1.msra.mxu0 0.0
        %1545 = vmatprep.subr.mxu0 0.0
        %1546 = vmatpush1.msra.mxu0 0.0
        %1547 = vmatprep.subr.mxu0 0.0
        %1548 = vmatpush1.msra.mxu0 0.0
        %1549 = vmatprep.subr.mxu0 0.0
        %1550 = vmatpush1.msra.mxu0 0.0
        %1551 = vmatprep.subr.mxu0 0.0
        %1552 = vmatpush1.msra.mxu0 0.0
        %1553 = vmatprep.subr.mxu0 0.0
        %1554 = vmatpush1.msra.mxu0 0.0
        %1555 = vmatprep.subr.mxu0 0.0
        %1556 = vmatpush1.msra.mxu0 0.0
        %1557 = vmatprep.subr.mxu0 0.0
        %1558 = vmatpush1.msra.mxu0 0.0
        %1559 = vmatprep.subr.mxu0 0.0
        %1560 = vmatpush1.msra.mxu0 0.0
        %1561 = vmatprep.subr.mxu0 0.0
        %1562 = vmatpush1.msra.mxu0 0.0
        %1563 = vmatprep.subr.mxu0 0.0
        %1564 = vmatpush1.msra.mxu0 0.0
        %1565 = vmatprep.subr.mxu0 0.0
        %1566 = vmatpush1.msra.mxu0 0.0
        %1567 = vmatprep.subr.mxu0 0.0
        %1568 = vmatpush1.msra.mxu0 0.0
        %1569 = vmatprep.subr.mxu0 0.0
        %1570 = vmatpush1.msra.mxu0 0.0
        %1571 = vmatprep.subr.mxu0 0.0
        %1572 = vmatpush1.msra.mxu0 0.0
        %1573 = vmatprep.subr.mxu0 0.0
        %1574 = vmatpush1.msra.mxu0 0.0
        %1575 = vmatprep.subr.mxu0 0.0
        %1576 = vmatpush1.msra.mxu0 0.0
        %1577 = vmatprep.subr.mxu0 0.0
        %1578 = vmatpush1.msra.mxu0 0.0
        %1579 = vmatprep.subr.mxu0 0.0
        %1580 = vmatpush1.msra.mxu0 0.0
        %1581 = vmatprep.subr.mxu0 0.0
        %1582 = vmatpush1.msra.mxu0 0.0
        %1583 = vmatprep.subr.mxu0 0.0
        %1584 = vmatpush1.msra.mxu0 0.0
        %1585 = vmatprep.subr.mxu0 0.0
        %1586 = vmatpush1.msra.mxu0 0.0
        %1587 = vmatprep.subr.mxu0 0.0
        %1588 = vmatpush1.msra.mxu0 0.0
        %1589 = vmatprep.subr.mxu0 0.0
        %1590 = vmatpush1.msra.mxu0 0.0
        %1591 = vmatprep.subr.mxu0 0.0
        %1592 = vmatpush1.msra.mxu0 0.0
        %1593 = vmatprep.subr.mxu0 0.0
        %1594 = vmatpush1.msra.mxu0 0.0
        %1595 = vmatprep.mubr.f32.mxu0 0.0
        %1596 = vmatmul.mubr.f32.gmra.mrb[0].mxu0 %v1526
        %v1597 = vpop.f32.mrb[0].mxu0
        %v1598 = vadd.f32 0.0, %v1597
        %v1599 = vpop.f32.mrb[0].mxu0
        %1600 = vmatprep.mubr.f32.mxu0 0.0
        %1601 = vmatmul.mubr.f32.gmra.mrb[0].mxu0 %v1529
        %v1602 = vpop.f32.mrb[0].mxu0
        %v1603 = vadd.f32 0.0, %v1602
        %v1604 = vpop.f32.mrb[0].mxu0
        %1605 = vdwg.mxu0
        %1606 = vrot.lane.b32.xlu0 %v999, 104
        %v1607 = vpop.permute.xlu0 %1606
        %1608 = vrot.lane.b32.xlu0 %v1000, 104
        %v1609 = vpop.permute.xlu0 %1608
        %1610 = vrot.lane.b32.xlu0 %v929, 104
        %v1611 = vpop.permute.xlu0 %1610
        %1612 = vrot.lane.b32.xlu0 %v932, 104
        %v1613 = vpop.permute.xlu0 %1612
        %v1614 = vsel %vm1012, %v1607, 0
        %v1616 = vsel %vm1012, %v1609, 0
        %v1618 = vsel %vm1012, %v1611, 0
        %v1620 = vsel %vm1012, %v1613, 0
        %1622 = vmatprep.subr.mxu0 0.0
        %1623 = vmatpush1.xpose.msra.mxu0 %v1618
        %1624 = vmatprep.subr.mxu0 0.0
        %1625 = vmatpush1.xpose.msra.mxu0 %v1620
        %1626 = vmatprep.subr.mxu0 0.0
        %1627 = vmatpush1.xpose.msra.mxu0 0.0
        %1628 = vmatprep.subr.mxu0 0.0
        %1629 = vmatpush1.xpose.msra.mxu0 0.0
        %1630 = vmatprep.subr.mxu0 0.0
        %1631 = vmatpush1.xpose.msra.mxu0 0.0
        %1632 = vmatprep.subr.mxu0 0.0
        %1633 = vmatpush1.xpose.msra.mxu0 0.0
        %1634 = vmatprep.subr.mxu0 0.0
        %1635 = vmatpush1.xpose.msra.mxu0 0.0
        %1636 = vmatprep.subr.mxu0 0.0
        %1637 = vmatpush1.xpose.msra.mxu0 0.0
        %1638 = vmatprep.subr.mxu0 0.0
        %1639 = vmatpush1.xpose.msra.mxu0 0.0
        %1640 = vmatprep.subr.mxu0 0.0
        %1641 = vmatpush1.xpose.msra.mxu0 0.0
        %1642 = vmatprep.subr.mxu0 0.0
        %1643 = vmatpush1.xpose.msra.mxu0 0.0
        %1644 = vmatprep.subr.mxu0 0.0
        %1645 = vmatpush1.xpose.msra.mxu0 0.0
        %1646 = vmatprep.subr.mxu0 0.0
        %1647 = vmatpush1.xpose.msra.mxu0 0.0
        %1648 = vmatprep.subr.mxu0 0.0
        %1649 = vmatpush1.xpose.msra.mxu0 0.0
        %1650 = vmatprep.subr.mxu0 0.0
        %1651 = vmatpush1.xpose.msra.mxu0 0.0
        %1652 = vmatprep.subr.mxu0 0.0
        %1653 = vmatpush1.xpose.msra.mxu0 0.0
        %1654 = vmatprep.subr.mxu0 0.0
        %1655 = vmatpush1.xpose.msra.mxu0 0.0
        %1656 = vmatprep.subr.mxu0 0.0
        %1657 = vmatpush1.xpose.msra.mxu0 0.0
        %1658 = vmatprep.subr.mxu0 0.0
        %1659 = vmatpush1.xpose.msra.mxu0 0.0
        %1660 = vmatprep.subr.mxu0 0.0
        %1661 = vmatpush1.xpose.msra.mxu0 0.0
        %1662 = vmatprep.subr.mxu0 0.0
        %1663 = vmatpush1.xpose.msra.mxu0 0.0
        %1664 = vmatprep.subr.mxu0 0.0
        %1665 = vmatpush1.xpose.msra.mxu0 0.0
        %1666 = vmatprep.subr.mxu0 0.0
        %1667 = vmatpush1.xpose.msra.mxu0 0.0
        %1668 = vmatprep.subr.mxu0 0.0
        %1669 = vmatpush1.xpose.msra.mxu0 0.0
        %1670 = vmatprep.subr.mxu0 0.0
        %1671 = vmatpush1.xpose.msra.mxu0 0.0
        %1672 = vmatprep.subr.mxu0 0.0
        %1673 = vmatpush1.xpose.msra.mxu0 0.0
        %1674 = vmatprep.subr.mxu0 0.0
        %1675 = vmatpush1.xpose.msra.mxu0 0.0
        %1676 = vmatprep.subr.mxu0 0.0
        %1677 = vmatpush1.xpose.msra.mxu0 0.0
        %1678 = vmatprep.subr.mxu0 0.0
        %1679 = vmatpush1.xpose.msra.mxu0 0.0
        %1680 = vmatprep.subr.mxu0 0.0
        %1681 = vmatpush1.xpose.msra.mxu0 0.0
        %1682 = vmatprep.subr.mxu0 0.0
        %1683 = vmatpush1.xpose.msra.mxu0 0.0
        %1684 = vmatprep.subr.mxu0 0.0
        %1685 = vmatpush1.xpose.msra.mxu0 0.0
        %1686 = vmatprep.mubr.f32.mxu0 0.0
        %1687 = vmatmul.mubr.f32.gmra.mrb[0].mxu0 %v1614
        %v1688 = vpop.f32.mrb[0].mxu0
        %v1689 = vadd.f32 %v1010, %v1688
        %v1690 = vpop.f32.mrb[0].mxu0
        %1691 = vmatprep.mubr.f32.mxu0 0.0
        %1692 = vmatmul.mubr.f32.gmra.mrb[0].mxu0 %v1616
        %v1693 = vpop.f32.mrb[0].mxu0
        %v1694 = vadd.f32 %v1011, %v1693
        %v1695 = vpop.f32.mrb[0].mxu0
        %1696 = vdwg.mxu0
        %v1697 = vsel %vm1100, %v1689, -inf
        %1698 = vmax.xlane.f32.xlu0 %v1697
        %v1699 = vpop.xlane.xlu0 %1698
        %v1700 = vsel %vm1100, %v1694, -inf
        %1701 = vmax.xlane.f32.xlu0 %v1700
        %v1702 = vpop.xlane.xlu0 %1701
        %v1703 = vsub.f32 %v1689, %v1699
        %v1704 = vsub.f32 %v1694, %v1702
        %v1705 = vmul.f32 %v1703, 1.442695
        %v1706 = vpow.pop %v1705
        %v1707 = vmul.f32 %v1704, 1.442695
        %v1708 = vpow.pop %v1707
        %v1709 = vsel %vm1100, %v1706, 0.0
        %1710 = vadd.xlane.f32.xlu0 %v1709
        %v1711 = vpop.xlane.xlu0 %1710
        %v1712 = vsel %vm1100, %v1708, 0.0
        %1713 = vadd.xlane.f32.xlu0 %v1712
        %v1714 = vpop.xlane.xlu0 %1713
        %v1715 = vrcp.pop %v1711
        %v1716 = vrcp.pop %v1714
        %v1717 = vmul.f32 %v1706, %v1715
        %v1718 = vmul.f32 %v1708, %v1716
        %1719 = vrot.lane.b32.xlu0 %v993, 104
        %v1720 = vpop.permute.xlu0 %1719
        %1721 = vrot.lane.b32.xlu0 %v996, 104
        %v1722 = vpop.permute.xlu0 %1721
        %v1726 = vsel %vm1100, %v1717, 0
        %v1729 = vsel %vm1100, %v1718, 0
        %1731 = vmatprep.subr.mxu0 0.0
        %1732 = vmatpush1.msra.mxu0 %v1720
        %1733 = vmatprep.subr.mxu0 0.0
        %1734 = vmatpush1.msra.mxu0 %v1722
        %1735 = vmatprep.subr.mxu0 0.0
        %1736 = vmatpush1.msra.mxu0 0.0
        %1737 = vmatprep.subr.mxu0 0.0
        %1738 = vmatpush1.msra.mxu0 0.0
        %1739 = vmatprep.subr.mxu0 0.0
        %1740 = vmatpush1.msra.mxu0 0.0
        %1741 = vmatprep.subr.mxu0 0.0
        %1742 = vmatpush1.msra.mxu0 0.0
        %1743 = vmatprep.subr.mxu0 0.0
        %1744 = vmatpush1.msra.mxu0 0.0
        %1745 = vmatprep.subr.mxu0 0.0
        %1746 = vmatpush1.msra.mxu0 0.0
        %1747 = vmatprep.subr.mxu0 0.0
        %1748 = vmatpush1.msra.mxu0 0.0
        %1749 = vmatprep.subr.mxu0 0.0
        %1750 = vmatpush1.msra.mxu0 0.0
        %1751 = vmatprep.subr.mxu0 0.0
        %1752 = vmatpush1.msra.mxu0 0.0
        %1753 = vmatprep.subr.mxu0 0.0
        %1754 = vmatpush1.msra.mxu0 0.0
        %1755 = vmatprep.subr.mxu0 0.0
        %1756 = vmatpush1.msra.mxu0 0.0
        %1757 = vmatprep.subr.mxu0 0.0
        %1758 = vmatpush1.msra.mxu0 0.0
        %1759 = vmatprep.subr.mxu0 0.0
        %1760 = vmatpush1.msra.mxu0 0.0
        %1761 = vmatprep.subr.mxu0 0.0
        %1762 = vmatpush1.msra.mxu0 0.0
        %1763 = vmatprep.subr.mxu0 0.0
        %1764 = vmatpush1.msra.mxu0 0.0
        %1765 = vmatprep.subr.mxu0 0.0
        %1766 = vmatpush1.msra.mxu0 0.0
        %1767 = vmatprep.subr.mxu0 0.0
        %1768 = vmatpush1.msra.mxu0 0.0
        %1769 = vmatprep.subr.mxu0 0.0
        %1770 = vmatpush1.msra.mxu0 0.0
        %1771 = vmatprep.subr.mxu0 0.0
        %1772 = vmatpush1.msra.mxu0 0.0
        %1773 = vmatprep.subr.mxu0 0.0
        %1774 = vmatpush1.msra.mxu0 0.0
        %1775 = vmatprep.subr.mxu0 0.0
        %1776 = vmatpush1.msra.mxu0 0.0
        %1777 = vmatprep.subr.mxu0 0.0
        %1778 = vmatpush1.msra.mxu0 0.0
        %1779 = vmatprep.subr.mxu0 0.0
        %1780 = vmatpush1.msra.mxu0 0.0
        %1781 = vmatprep.subr.mxu0 0.0
        %1782 = vmatpush1.msra.mxu0 0.0
        %1783 = vmatprep.subr.mxu0 0.0
        %1784 = vmatpush1.msra.mxu0 0.0
        %1785 = vmatprep.subr.mxu0 0.0
        %1786 = vmatpush1.msra.mxu0 0.0
        %1787 = vmatprep.subr.mxu0 0.0
        %1788 = vmatpush1.msra.mxu0 0.0
        %1789 = vmatprep.subr.mxu0 0.0
        %1790 = vmatpush1.msra.mxu0 0.0
        %1791 = vmatprep.subr.mxu0 0.0
        %1792 = vmatpush1.msra.mxu0 0.0
        %1793 = vmatprep.subr.mxu0 0.0
        %1794 = vmatpush1.msra.mxu0 0.0
        %1795 = vmatprep.mubr.f32.mxu0 0.0
        %1796 = vmatmul.mubr.f32.gmra.mrb[0].mxu0 %v1726
        %v1797 = vpop.f32.mrb[0].mxu0
        %v1798 = vadd.f32 0.0, %v1797
        %v1799 = vpop.f32.mrb[0].mxu0
        %1800 = vmatprep.mubr.f32.mxu0 0.0
        %1801 = vmatmul.mubr.f32.gmra.mrb[0].mxu0 %v1729
        %v1802 = vpop.f32.mrb[0].mxu0
        %v1803 = vadd.f32 0.0, %v1802
        %v1804 = vpop.f32.mrb[0].mxu0
        %1805 = vdwg.mxu0
        %1808 = vrot.lane.b32.xlu0 %v1398, 8
        %v1809 = vpop.permute.xlu0 %1808
        %1810 = vrot.lane.b32.xlu0 %v1403, 8
        %v1811 = vpop.permute.xlu0 %1810
        %1816 = vrot.lane.b32.xlu0 %v1598, 16
        %v1817 = vpop.permute.xlu0 %1816
        %1818 = vrot.lane.b32.xlu0 %v1603, 16
        %v1819 = vpop.permute.xlu0 %1818
        %1824 = vrot.lane.b32.xlu0 %v1798, 24
        %v1825 = vpop.permute.xlu0 %1824
        %1826 = vrot.lane.b32.xlu0 %v1803, 24
        %v1827 = vpop.permute.xlu0 %1826
        %v1830 = vsel %vm1012, %v1196, %v1809
        %v1831 = vsel %vm1012, %v1201, %v1811
        %v1832 = vsel %vm1100, %v1830, %v1817
        %v1833 = vsel %vm1100, %v1831, %v1819
        %vm1834 = vcmask 195584
        %v1835 = vsel %vm1834, %v1832, %v1825
        %v1836 = vsel %vm1834, %v1833, %v1827
        %v1837 = vpack.c.bf16 %v1836, %v1835
        %v1838 = vld [vmem:[%s11] sm:$0xf]
        %v1839 = vld [vmem:[%s11 + $0x4] sm:$0xf]
        %v1840 = vld [vmem:[%s11 + $0x8] sm:$0xf]
        %v1841 = vld [vmem:[%s11 + $0xc] sm:$0xf]
        %v1842 = vld [vmem:[#allocation16] sm:$0x1]
        %v1844 = vlaneseq
        %v1845 = vshrl.u32 %v1844, 7
        %v1846 = vsub.s32 0, %v1845
        %v1847 = vrot.slane %v1842, %v1846
        %v1853 = vunpack.c.l.b16 %v1838
        %v1854 = vunpack.c.l.b16 %v1839
        %v1855 = vunpack.c.l.b16 %v1840
        %v1856 = vunpack.c.l.b16 %v1841
        %v1857 = vpack.c.b16 %v1854, %v1853
        %v1858 = vpack.c.b16 %v1856, %v1855
        %v1862 = vsel %vm757, %v1837, 0
        %1864 = vmatprep.subr.bf16.mxu0 0
        %1865 = vmatpush1.bf16.msra.mxu0 %v1857
        %1866 = vmatprep.subr.bf16.mxu0 0
        %1867 = vmatpush1.bf16.msra.mxu0 %v1858
        %1868 = vmatprep.subr.bf16.mxu0 0
        %1869 = vmatpush1.bf16.msra.mxu0 0
        %1870 = vmatprep.subr.bf16.mxu0 0
        %1871 = vmatpush1.bf16.msra.mxu0 0
        %1872 = vmatprep.subr.bf16.mxu0 0
        %1873 = vmatpush1.bf16.msra.mxu0 0
        %1874 = vmatprep.subr.bf16.mxu0 0
        %1875 = vmatpush1.bf16.msra.mxu0 0
        %1876 = vmatprep.subr.bf16.mxu0 0
        %1877 = vmatpush1.bf16.msra.mxu0 0
        %1878 = vmatprep.subr.bf16.mxu0 0
        %1879 = vmatpush1.bf16.msra.mxu0 0
        %1880 = vmatprep.subr.bf16.mxu0 0
        %1881 = vmatpush1.bf16.msra.mxu0 0
        %1882 = vmatprep.subr.bf16.mxu0 0
        %1883 = vmatpush1.bf16.msra.mxu0 0
        %1884 = vmatprep.subr.bf16.mxu0 0
        %1885 = vmatpush1.bf16.msra.mxu0 0
        %1886 = vmatprep.subr.bf16.mxu0 0
        %1887 = vmatpush1.bf16.msra.mxu0 0
        %1888 = vmatprep.subr.bf16.mxu0 0
        %1889 = vmatpush1.bf16.msra.mxu0 0
        %1890 = vmatprep.subr.bf16.mxu0 0
        %1891 = vmatpush1.bf16.msra.mxu0 0
        %1892 = vmatprep.subr.bf16.mxu0 0
        %1893 = vmatpush1.bf16.msra.mxu0 0
        %1894 = vmatprep.subr.bf16.mxu0 0
        %1895 = vmatpush1.bf16.msra.mxu0 0
        %1896 = vmatprep.mubr.bf16.mxu0 0
        %1897 = vmatmul.mubr.bf16.gmra.mrb[0].mxu0 %v1862
        %v1898 = vpop.f32.mrb[0].mxu0
        %v1899 = vadd.f32 %v1847, %v1898
        %v1900 = vpop.f32.mrb[0].mxu0
        %v1901 = vpop.f32.mrb[0].mxu0
        %v1902 = vadd.f32 %v1847, %v1901
        %v1903 = vpop.f32.mrb[0].mxu0
        %1904 = vdwg.mxu0
        %v1905 = vadd.f32 %v755, %v1899
        %v1906 = vadd.f32 %v756, %v1902
        %v1907 = vsel %vm757, %v1905, 0.0
        %1908 = vadd.xlane.f32.xlu0 %v1907
        %v1909 = vpop.xlane.xlu0 %1908
        %v1910 = vsel %vm757, %v1906, 0.0
        %1911 = vadd.xlane.f32.xlu0 %v1910
        %v1912 = vpop.xlane.xlu0 %1911
        %v1913 = vmul.f32 %v1909, %v764
        %v1914 = vmul.f32 %v1912, %v764
        %v1915 = vsub.f32 %v1905, %v1913
        %v1916 = vsub.f32 %v1906, %v1914
        %v1917 = vmul.f32 %v1915, %v1915
        %v1918 = vmul.f32 %v1916, %v1916
        %v1919 = vsel %vm757, %v1917, 0.0
        %1920 = vadd.xlane.f32.xlu0 %v1919
        %v1921 = vpop.xlane.xlu0 %1920
        %v1922 = vsel %vm757, %v1918, 0.0
        %1923 = vadd.xlane.f32.xlu0 %v1922
        %v1924 = vpop.xlane.xlu0 %1923
        %v1925 = vmul.f32 %v1921, %v764
        %v1926 = vmul.f32 %v1924, %v764
        %v1927 = vadd.f32 %v1925, 1e-05
        %v1928 = vadd.f32 %v1926, 1e-05
        %v1929 = vrsqrt.pop %v1927
        %v1930 = vrsqrt.pop %v1928
        %v1931 = vmul.f32 %v1915, %v1929
        %v1932 = vmul.f32 %v1916, %v1930
        %v1933 = vld [vmem:[#allocation17] sm:$0x1]
        %v1935 = vlaneseq
        %v1936 = vshrl.u32 %v1935, 7
        %v1937 = vsub.s32 0, %v1936
        %v1938 = vrot.slane %v1933, %v1937
        %v1940 = vmul.f32 %v1931, %v1938
        %v1941 = vmul.f32 %v1932, %v1938
        %v1942 = vld [vmem:[%s14] sm:$0x1]
        %v1944 = vlaneseq
        %v1945 = vshrl.u32 %v1944, 7
        %v1946 = vsub.s32 0, %v1945
        %v1947 = vrot.slane %v1942, %v1946
        %v1949 = vadd.f32 %v1940, %v1947
        %v1950 = vadd.f32 %v1941, %v1947
        %v1951 = vpack.c.bf16 %v1950, %v1949
        %v1952 = vld [vmem:[%s15] sm:$0xf]
        %v1953 = vld [vmem:[%s15 + $0x4] sm:$0xf]
        %v1954 = vld [vmem:[%s15 + $0x8] sm:$0xf]
        %v1955 = vld [vmem:[%s15 + $0xc] sm:$0xf]
        %v1956 = vld [vmem:[%s16] sm:$0x1]
        %v1958 = vlaneseq
        %v1959 = vshrl.u32 %v1958, 7
        %v1960 = vsub.s32 0, %v1959
        %v1961 = vrot.slane %v1956, %v1960
        %v1967 = vunpack.c.l.b16 %v1952
        %v1968 = vunpack.c.l.b16 %v1953
        %v1969 = vunpack.c.l.b16 %v1954
        %v1970 = vunpack.c.l.b16 %v1955
        %v1971 = vpack.c.b16 %v1968, %v1967
        %v1972 = vpack.c.b16 %v1970, %v1969
        %v1976 = vsel %vm757, %v1951, 0
        %1978 = vmatprep.subr.bf16.mxu0 0
        %1979 = vmatpush1.bf16.msra.mxu0 %v1971
        %1980 = vmatprep.subr.bf16.mxu0 0
        %1981 = vmatpush1.bf16.msra.mxu0 %v1972
        %1982 = vmatprep.subr.bf16.mxu0 0
        %1983 = vmatpush1.bf16.msra.mxu0 0
        %1984 = vmatprep.subr.bf16.mxu0 0
        %1985 = vmatpush1.bf16.msra.mxu0 0
        %1986 = vmatprep.subr.bf16.mxu0 0
        %1987 = vmatpush1.bf16.msra.mxu0 0
        %1988 = vmatprep.subr.bf16.mxu0 0
        %1989 = vmatpush1.bf16.msra.mxu0 0
        %1990 = vmatprep.subr.bf16.mxu0 0
        %1991 = vmatpush1.bf16.msra.mxu0 0
        %1992 = vmatprep.subr.bf16.mxu0 0
        %1993 = vmatpush1.bf16.msra.mxu0 0
        %1994 = vmatprep.subr.bf16.mxu0 0
        %1995 = vmatpush1.bf16.msra.mxu0 0
        %1996 = vmatprep.subr.bf16.mxu0 0
        %1997 = vmatpush1.bf16.msra.mxu0 0
        %1998 = vmatprep.subr.bf16.mxu0 0
        %1999 = vmatpush1.bf16.msra.mxu0 0
        %2000 = vmatprep.subr.bf16.mxu0 0
        %2001 = vmatpush1.bf16.msra.mxu0 0
        %2002 = vmatprep.subr.bf16.mxu0 0
        %2003 = vmatpush1.bf16.msra.mxu0 0
        %2004 = vmatprep.subr.bf16.mxu0 0
        %2005 = vmatpush1.bf16.msra.mxu0 0
        %2006 = vmatprep.subr.bf16.mxu0 0
        %2007 = vmatpush1.bf16.msra.mxu0 0
        %2008 = vmatprep.subr.bf16.mxu0 0
        %2009 = vmatpush1.bf16.msra.mxu0 0
        %2010 = vmatprep.mubr.bf16.mxu0 0
        %2011 = vmatmul.mubr.bf16.gmra.mrb[0].mxu0 %v1976
        %v2012 = vpop.f32.mrb[0].mxu0
        %v2013 = vadd.f32 %v1961, %v2012
        %v2014 = vpop.f32.mrb[0].mxu0
        %v2015 = vpop.f32.mrb[0].mxu0
        %v2016 = vadd.f32 %v1961, %v2015
        %v2017 = vpop.f32.mrb[0].mxu0
        %2018 = vdwg.mxu0
        %v2019 = vmul.f32 %v2013, %v2013
        %v2020 = vmul.f32 %v2016, %v2016
        %v2021 = vmul.f32 %v2013, %v2019
        %v2022 = vmul.f32 %v2016, %v2020
        %v2023 = vmul.f32 %v2021, 0.044715
        %v2024 = vmul.f32 %v2022, 0.044715
        %v2025 = vadd.f32 %v2013, %v2023
        %v2026 = vadd.f32 %v2016, %v2024
        %v2027 = vmul.f32 %v2025, 0.7978846
        %v2028 = vmul.f32 %v2026, 0.7978846
        %v2029 = vtanh.pop %v2027
        %v2030 = vtanh.pop %v2028
        %v2031 = vadd.f32 %v2029, 1.0
        %v2032 = vadd.f32 %v2030, 1.0
        %v2033 = vmul.f32 %v2031, 0.5
        %v2034 = vmul.f32 %v2032, 0.5
        %v2035 = vmul.f32 %v2013, %v2033
        %v2036 = vmul.f32 %v2016, %v2034
        %v2037 = vpack.c.bf16 %v2036, %v2035
        %v2038 = vld [vmem:[%s17] sm:$0xf]
        %v2039 = vld [vmem:[%s17 + $0x4] sm:$0xf]
        %v2040 = vld [vmem:[%s17 + $0x8] sm:$0xf]
        %v2041 = vld [vmem:[%s17 + $0xc] sm:$0xf]
        %v2042 = vld [vmem:[%s17 + $0x10] sm:$0xf]
        %v2043 = vld [vmem:[%s17 + $0x14] sm:$0xf]
        %v2044 = vld [vmem:[%s17 + $0x18] sm:$0xf]
        %v2045 = vld [vmem:[%s17 + $0x1c] sm:$0xf]
        %v2046 = vld [vmem:[%s18] sm:$0x1]
        %v2048 = vlaneseq
        %v2049 = vshrl.u32 %v2048, 7
        %v2050 = vsub.s32 0, %v2049
        %v2051 = vrot.slane %v2046, %v2050
        %v2061 = vunpack.c.l.b16 %v2038
        %v2062 = vunpack.c.l.b16 %v2039
        %v2063 = vunpack.c.l.b16 %v2040
        %v2064 = vunpack.c.l.b16 %v2041
        %v2065 = vunpack.c.l.b16 %v2042
        %v2066 = vunpack.c.l.b16 %v2043
        %v2067 = vunpack.c.l.b16 %v2044
        %v2068 = vunpack.c.l.b16 %v2045
        %v2069 = vpack.c.b16 %v2062, %v2061
        %v2070 = vpack.c.b16 %v2064, %v2063
        %v2071 = vpack.c.b16 %v2066, %v2065
        %v2072 = vpack.c.b16 %v2068, %v2067
        %vm2077 = vcmask 523264
        %v2079 = vsel %vm2077, %v2037, 0
        %2081 = vmatprep.subr.bf16.mxu0 0
        %2082 = vmatpush1.bf16.msra.mxu0 %v2069
        %2083 = vmatprep.subr.bf16.mxu0 0
        %2084 = vmatpush1.bf16.msra.mxu0 %v2070
        %2085 = vmatprep.subr.bf16.mxu0 0
        %2086 = vmatpush1.bf16.msra.mxu0 %v2071
        %2087 = vmatprep.subr.bf16.mxu0 0
        %2088 = vmatpush1.bf16.msra.mxu0 %v2072
        %2089 = vmatprep.subr.bf16.mxu0 0
        %2090 = vmatpush1.bf16.msra.mxu0 0
        %2091 = vmatprep.subr.bf16.mxu0 0
        %2092 = vmatpush1.bf16.msra.mxu0 0
        %2093 = vmatprep.subr.bf16.mxu0 0
        %2094 = vmatpush1.bf16.msra.mxu0 0
        %2095 = vmatprep.subr.bf16.mxu0 0
        %2096 = vmatpush1.bf16.msra.mxu0 0
        %2097 = vmatprep.subr.bf16.mxu0 0
        %2098 = vmatpush1.bf16.msra.mxu0 0
        %2099 = vmatprep.subr.bf16.mxu0 0
        %2100 = vmatpush1.bf16.msra.mxu0 0
        %2101 = vmatprep.subr.bf16.mxu0 0
        %2102 = vmatpush1.bf16.msra.mxu0 0
        %2103 = vmatprep.subr.bf16.mxu0 0
        %2104 = vmatpush1.bf16.msra.mxu0 0
        %2105 = vmatprep.subr.bf16.mxu0 0
        %2106 = vmatpush1.bf16.msra.mxu0 0
        %2107 = vmatprep.subr.bf16.mxu0 0
        %2108 = vmatpush1.bf16.msra.mxu0 0
        %2109 = vmatprep.subr.bf16.mxu0 0
        %2110 = vmatpush1.bf16.msra.mxu0 0
        %2111 = vmatprep.subr.bf16.mxu0 0
        %2112 = vmatpush1.bf16.msra.mxu0 0
        %2113 = vmatprep.mubr.bf16.mxu0 0
        %2114 = vmatmul.mubr.bf16.gmra.mrb[0].mxu0 %v2079
        %v2115 = vpop.f32.mrb[0].mxu0
        %v2116 = vadd.f32 %v2051, %v2115
        %v2117 = vpop.f32.mrb[0].mxu0
        %v2118 = vpop.f32.mrb[0].mxu0
        %v2119 = vadd.f32 %v2051, %v2118
        %v2120 = vpop.f32.mrb[0].mxu0
        %2121 = vdwg.mxu0
        %v2122 = vadd.f32 %v1905, %v2116
        %v2123 = vadd.f32 %v1906, %v2119
        %2124 = vst.msk [vmem:[%s748] sm:$0xff] %vm757, %v2122
        %2125 = vst.msk [vmem:[%s748 + $0x8] sm:$0xff] %vm757, %v2123
        %s2126 = sand.u32 %s458, 1
        %s2127 = scalar_lea.sflag [#allocation4], %s2126
        %s2128 = sand.u32 %s458, 1
        %s2129 = smul.addr %s2128, 16
        %s2130 = scalar_lea.vmem [#allocation19], %s2129
        // Predicated region
        $region137: #{tpu_custom_call.1} parent=95 // pred_check
          %p2131 = pneg %p468
        $region138: #{tpu_custom_call.1} parent=95 // pred_check_branch
          %2133 = sbr.rel (%p2131) target = $region140
        $region139: #{tpu_custom_call.1} parent=95 // pred_region
          %s2135 = ssub.s32 256, 256
          %2136 = vsyncadd %s2127, %s2135
          %s2137 = smul.addr %s41, 2
          %s2138 = smul.addr %s2137, 128
          %s2139 = scalar_lea.hbm %s19, %s2138
          %s2140 = sshll.u32 %s2130, 4
          %s2141 = int_to_ptr.vmem [resolvable:$true] %s2140
          %2146 = dma.vmem_to_hbm [thread:$0]  %s2141, 256, %s2139, %s2127, 128, 128, 8
        $region140: #{tpu_custom_call.1} parent=95 // pred_fallthru
          _
      $region96: #{tpu_custom_call.1} parent=5 // pred_fallthru
        _
      %p2147 = scmp.le.s32.totalorder 2, %s36
      // Predicated region
      $region141: #{tpu_custom_call.1} parent=5 // pred_check
        %p2148 = pneg %p2147
      $region142: #{tpu_custom_call.1} parent=5 // pred_check_branch
        %2150 = sbr.rel (%p2148) target = $region144
      $region143: #{tpu_custom_call.1} parent=5 // pred_region
        %s2151 = ssub.s32 %s36, 2
        // Predicated region
        $region145: #{tpu_custom_call.1} parent=143 // pred_check
          %p2152 = pneg %p474
        $region146: #{tpu_custom_call.1} parent=143 // pred_check_branch
          %2154 = sbr.rel (%p2152) target = $region148
        $region147: #{tpu_custom_call.1} parent=143 // pred_region
          %s2155 = sand.u32 %s459, 1
          %s2156 = scalar_lea.sflag [#allocation4], %s2155
          %s2157 = sand.u32 %s459, 1
          %s2158 = smul.addr %s2157, 16
          %s2159 = scalar_lea.vmem [#allocation19], %s2158
          %2160 = dma.done %s2156, 256
        $region148: #{tpu_custom_call.1} parent=143 // pred_fallthru
          _
      $region144: #{tpu_custom_call.1} parent=5 // pred_fallthru
        _
    $region6: #{tpu_custom_call.1} parent=1 // loop_footer
      %s40 = sadd.s32 1, %s36
    $region7: #{tpu_custom_call.1} parent=1 // loop_footer_branch
      %35 = sbr.rel target = $region3
    $region8: #{tpu_custom_call.1} parent=1 // loop_exit
      _
    %2161 = vsyncpa [#allocation3], 1
    %s2162 = scalar_lea.sflag [#allocation3], 1
    %2163 = vsyncpa %s2162, 1
    %2164 = vsyncpa [#allocation6], 1
    %2165 = vsyncpa [#allocation9], 1
    %2166 = vsyncpa [#allocation12], 1
    %2167 = vsyncpa [#allocation15], 1
    %2168 = vsyncpa [#allocation18], 1
    %2169 = vsyncpa [#allocation4], 1
    %s2170 = scalar_lea.sflag [#allocation4], 1
    %2171 = vsyncpa %s2170, 1

</llo_original>
